<compile_context>
chip_gen: v5e
topology: v5e:2x2
jax: 0.10.0
libtpu: 0.0.40
codegen_flags: <defaults>
</compile_context>

<pallas_src>
import numpy as np
import jax
import jax.numpy as jnp
from jax import lax
from jax.experimental import pallas as pl
from jax.experimental.pallas import tpu as pltpu

LN_EPS = 1e-5            # torch.nn.LayerNorm default eps
TEMPERATURE = 0.07
DEFAULT_TILE_HW = 2048   # spatial columns per tile (multiple of 512 lanes)


def _round_up(x, n):
    return (x + n - 1) // n * n


def _layernorm(x, w, b):
    mu = jnp.mean(x, axis=-1, keepdims=True)
    xc = x - mu
    var = jnp.mean(xc * xc, axis=-1, keepdims=True)
    return xc * lax.rsqrt(var + LN_EPS) * w + b


def _pooled_mask_embed_kernel(
    x_ref,       # (1, C, tHW)  bf16  mask_features spatial tile
    m_ref,       # (1, Q, tHW)  bf16  pred_masks (logits) spatial tile
    dec_ref,     # (1, Q, C)    f32   decoder_output
    ln1w_ref, ln1b_ref,        # (1, C)  pool_proj LayerNorm
    w_pp_ref, b_pp_ref,        # (C, C), (1, C)  pool_proj Linear
    ln2w_ref, ln2b_ref,        # (1, C)  mask_embed LayerNorm
    w1_ref, b1_ref,            # (C, C), (1, C)   MLP layer 1
    w2_ref, b2_ref,            # (C, C), (1, C)   MLP layer 2
    w3_ref, b3_ref,            # (C, P), (1, P)   MLP layer 3
    pooled_out_ref,            # (1, Q, C)
    embed_out_ref,             # (1, Q, P)
    pool_acc,                  # (Q, C) f32 scratch  (unnormalised pooled sums)
    den_acc,                   # (Q, 1) f32 scratch  (mask pixel counts)
):
    f32 = jnp.float32
    t = pl.program_id(1)

    @pl.when(t == 0)
    def _():
        pool_acc[...] = jnp.zeros_like(pool_acc)
        den_acc[...] = jnp.zeros_like(den_acc)

    # ---------------- MaskPooling partial (this spatial tile) ----------------
    # sigmoid(x) > 0.5  <=>  x > 0 : threshold directly on the logits.
    hard = m_ref[0] > 0.0                          # bool (Q, tHW), VPU compare
    mask = hard.astype(jnp.bfloat16)               # exact 0/1 in bf16
    den_acc[...] += jnp.sum(hard.astype(f32), axis=-1, keepdims=True)
    # (Q, tHW) . (C, tHW)^T contracted over the spatial axis -> (Q, C), f32 acc.
    pool_acc[...] += lax.dot_general(
        mask, x_ref[0], (((1,), (1,)), ((), ())), preferred_element_type=f32)

    # ---------------- finalize: normalize + pool_proj + mask_embed MLP -------
    @pl.when(t == pl.num_programs(1) - 1)
    def _():
        # Per-row reciprocal on the EUP slot; any relative error is a uniform
        # per-row scale and cancels exactly through the LayerNorm that follows.
        inv = pl.reciprocal(den_acc[...] + 1e-8, approx=True)
        pooled = pool_acc[...] * inv               # (Q, C)

        h = _layernorm(pooled, ln1w_ref[...], ln1b_ref[...])
        h = jnp.dot(h, w_pp_ref[...], preferred_element_type=f32) + b_pp_ref[...]
        h = h + dec_ref[0]                         # mask_pooled_x += decoder_output
        pooled_out_ref[0] = h

        e = _layernorm(h, ln2w_ref[...], ln2b_ref[...])
        e = jnp.maximum(
            jnp.dot(e, w1_ref[...], preferred_element_type=f32) + b1_ref[...], 0.0)
        e = jnp.maximum(
            jnp.dot(e, w2_ref[...], preferred_element_type=f32) + b2_ref[...], 0.0)
        e = jnp.dot(e, w3_ref[...], preferred_element_type=f32) + b3_ref[...]
        embed_out_ref[0] = e


def init_params(key, hidden_dim, projection_dim):
    """Deterministic synthetic parameters (shapes from the module __init__)."""
    ks = jax.random.split(key, 4)
    s = 0.05
    f32 = jnp.float32
    return {
        # pool_proj = LayerNorm(hidden) + Linear(hidden, hidden)
        "ln1_w": jnp.ones((1, hidden_dim), f32),
        "ln1_b": jnp.zeros((1, hidden_dim), f32),
        "w_pp": s * jax.random.normal(ks[0], (hidden_dim, hidden_dim), f32),
        "b_pp": jnp.zeros((1, hidden_dim), f32),
        # mask_embed = LayerNorm(mask_dim) + MLP(mask_dim, hidden, projection, 3)
        "ln2_w": jnp.ones((1, hidden_dim), f32),
        "ln2_b": jnp.zeros((1, hidden_dim), f32),
        "w1": s * jax.random.normal(ks[1], (hidden_dim, hidden_dim), f32),
        "b1": jnp.zeros((1, hidden_dim), f32),
        "w2": s * jax.random.normal(ks[2], (hidden_dim, hidden_dim), f32),
        "b2": jnp.zeros((1, hidden_dim), f32),
        "w3": s * jax.random.normal(ks[3], (hidden_dim, projection_dim), f32),
        "b3": jnp.zeros((1, projection_dim), f32),
        # logit_scale = log(1/temperature)
        "logit_scale": jnp.asarray(np.log(1.0 / TEMPERATURE), f32),
    }


def pooled_mask_embed(decoder_output, input_mask_embed, mask_features,
                      pred_logits, pred_masks, params, *,
                      tile_hw=DEFAULT_TILE_HW):
    """JAX/Pallas equivalent of PooledMaskEmbed.forward.

    input_mask_embed and pred_logits are accepted for signature fidelity but
    (exactly as in the PyTorch module) are unused.
    """
    del input_mask_embed, pred_logits
    B, C, H, W = mask_features.shape
    Q = pred_masks.shape[1]
    P = params["w3"].shape[1]

    hw = H * W
    t_hw = min(tile_hw, _round_up(hw, 128))        # lane-aligned spatial tile
    hw_pad = _round_up(hw, t_hw)
    n_t = hw_pad // t_hw

    # bf16 on the HBM side: halves the bandwidth-bound (C+Q)*HW traffic.  The
    # 0/1 hard mask is exact in bf16; pooling accumulates in f32 in-kernel.
    x = mask_features.reshape(B, C, hw).astype(jnp.bfloat16)
    m = pred_masks.reshape(B, Q, hw).astype(jnp.bfloat16)
    if hw_pad != hw:
        # Zero padding is exact: padded logits are 0 -> (0 > 0) == False, so the
        # padded columns contribute nothing to the pooled sum or the denominator.
        x = jnp.pad(x, ((0, 0), (0, 0), (0, hw_pad - hw)))
        m = jnp.pad(m, ((0, 0), (0, 0), (0, hw_pad - hw)))
    dec = decoder_output.astype(jnp.float32)

    weight_names = ("ln1_w", "ln1_b", "w_pp", "b_pp", "ln2_w", "ln2_b",
                    "w1", "b1", "w2", "b2", "w3", "b3")
    weights = [params[k].astype(jnp.float32) for k in weight_names]

    def full_spec(shape):
        nd = len(shape)
        # Constant block index across the whole grid: DMA'd once, kept resident.
        return pl.BlockSpec(shape, lambda b, t, _nd=nd: (0,) * _nd)

    in_specs = (
        [pl.BlockSpec((1, C, t_hw), lambda b, t: (b, 0, t)),
         pl.BlockSpec((1, Q, t_hw), lambda b, t: (b, 0, t)),
         pl.BlockSpec((1, Q, C), lambda b, t: (b, 0, 0))]
        + [full_spec(w.shape) for w in weights])
    out_specs = [pl.BlockSpec((1, Q, C), lambda b, t: (b, 0, 0)),
                 pl.BlockSpec((1, Q, P), lambda b, t: (b, 0, 0))]

    pooled, embed = pl.pallas_call(
        _pooled_mask_embed_kernel,
        out_shape=(jax.ShapeDtypeStruct((B, Q, C), jnp.float32),
                   jax.ShapeDtypeStruct((B, Q, P), jnp.float32)),
        grid_spec=pltpu.PrefetchScalarGridSpec(
            num_scalar_prefetch=0,
            grid=(B, n_t),                       # spatial reduction axis last
            in_specs=in_specs,
            out_specs=out_specs,
            scratch_shapes=[pltpu.VMEM((Q, C), jnp.float32),
                            pltpu.VMEM((Q, 1), jnp.float32)]),
        compiler_params=pltpu.CompilerParams(
            dimension_semantics=("parallel", "arbitrary")),
    )(x, m, dec, *weights)

    logit_scale = jnp.minimum(jnp.exp(params["logit_scale"]), 100.0)
    return {"mask_embed": embed,
            "mask_pooled_features": pooled,
            "logit_scale": logit_scale}


def _reference(decoder_output, mask_features, pred_masks, params):
    """Pure-JAX f32 reference mirroring the PyTorch forward."""
    mask = jax.nn.sigmoid(pred_masks)
    mask = (mask > 0.5).astype(jnp.float32)
    denorm = mask.sum(axis=(-1, -2), keepdims=True) + 1e-8
    pooled = jnp.einsum('bchw,bqhw->bqc', mask_features, mask / denorm)

    def ln(x, w, b):
        mu = x.mean(-1, keepdims=True)
        var = ((x - mu) ** 2).mean(-1, keepdims=True)
        return (x - mu) / jnp.sqrt(var + LN_EPS) * w + b

    h = ln(pooled, params["ln1_w"], params["ln1_b"])
    h = h @ params["w_pp"] + params["b_pp"]
    h = h + decoder_output
    e = ln(h, params["ln2_w"], params["ln2_b"])
    e = jnp.maximum(e @ params["w1"] + params["b1"], 0.0)
    e = jnp.maximum(e @ params["w2"] + params["b2"], 0.0)
    e = e @ params["w3"] + params["b3"]
    logit_scale = jnp.minimum(jnp.exp(params["logit_scale"]), 100.0)
    return {"mask_embed": e, "mask_pooled_features": h,
            "logit_scale": logit_scale}


if __name__ == "__main__":
    B, Q, H, W = 2, 8, 16, 16
    hidden_dim = 32          # == mask_dim (required by the PyTorch forward)
    projection_dim = 16

    key = jax.random.PRNGKey(0)
    k_dec, k_feat, k_mask, k_logits, k_ime, k_params = jax.random.split(key, 6)

    decoder_output = jax.random.normal(k_dec, (B, Q, hidden_dim), jnp.float32)
    input_mask_embed = jax.random.normal(k_ime, (B, Q, projection_dim), jnp.float32)  # unused
    mask_features = jax.random.normal(k_feat, (B, hidden_dim, H, W), jnp.float32)
    pred_logits = jax.random.normal(k_logits, (B, Q, 4), jnp.float32)                 # unused
    pred_masks = jax.random.normal(k_mask, (B, Q, H, W), jnp.float32)

    params = init_params(k_params, hidden_dim, projection_dim)
    ref = _reference(decoder_output, mask_features, pred_masks, params)

    def check(out):
        # bf16 inputs + native MXU precision -> relaxed tolerance vs f32 reference.
        np.testing.assert_allclose(np.asarray(out["mask_pooled_features"]),
                                   np.asarray(ref["mask_pooled_features"]),
                                   atol=2e-2, rtol=2e-2)
        np.testing.assert_allclose(np.asarray(out["mask_embed"]),
                                   np.asarray(ref["mask_embed"]),
                                   atol=2e-2, rtol=2e-2)
        np.testing.assert_allclose(np.asarray(out["logit_scale"]),
                                   np.asarray(ref["logit_scale"]),
                                   atol=1e-5, rtol=1e-5)

    # 1) whole spatial extent in one tile.
    out = pooled_mask_embed(decoder_output, input_mask_embed, mask_features,
                            pred_logits, pred_masks, params)
    jax.block_until_ready(out)
    check(out)

    # 2) forced multi-tile spatial reduction (exercises the accumulator path).
    out_tiled = pooled_mask_embed(decoder_output, input_mask_embed, mask_features,
                                  pred_logits, pred_masks, params, tile_hw=128)
    jax.block_until_ready(out_tiled)
    check(out_tiled)

    print("KERNEL_OK")
</pallas_src>

<mosaic_0001>
module attributes {stable_mosaic.version = 11 : i64} {
  func.func @_pooled_mask_embed_kernel(%arg0: i32, %arg1: i32, %arg2: memref<1x32x256xbf16, #tpu.memory_space<vmem>>, %arg3: memref<1x8x256xbf16, #tpu.memory_space<vmem>>, %arg4: memref<1x8x32xf32, #tpu.memory_space<vmem>>, %arg5: memref<1x32xf32, #tpu.memory_space<vmem>>, %arg6: memref<1x32xf32, #tpu.memory_space<vmem>>, %arg7: memref<32x32xf32, #tpu.memory_space<vmem>>, %arg8: memref<1x32xf32, #tpu.memory_space<vmem>>, %arg9: memref<1x32xf32, #tpu.memory_space<vmem>>, %arg10: memref<1x32xf32, #tpu.memory_space<vmem>>, %arg11: memref<32x32xf32, #tpu.memory_space<vmem>>, %arg12: memref<1x32xf32, #tpu.memory_space<vmem>>, %arg13: memref<32x32xf32, #tpu.memory_space<vmem>>, %arg14: memref<1x32xf32, #tpu.memory_space<vmem>>, %arg15: memref<32x16xf32, #tpu.memory_space<vmem>>, %arg16: memref<1x16xf32, #tpu.memory_space<vmem>>, %arg17: memref<1x8x32xf32, #tpu.memory_space<vmem>>, %arg18: memref<1x8x16xf32, #tpu.memory_space<vmem>>, %arg19: memref<8x32xf32, #tpu.memory_space<vmem>>, %arg20: memref<8x1xf32, #tpu.memory_space<vmem>>) attributes {dimension_semantics = [#tpu.dimension_semantics<parallel>, #tpu.dimension_semantics<arbitrary>], iteration_bounds = array<i64: 2, 1>, scalar_prefetch = 0 : i64, scratch_operands = 2 : i64, tpu.core_type = #tpu.core_type<tc>, window_params = [{transform_indices = @transform_0, window_bounds = array<i64: 1, 32, 256>}, {transform_indices = @transform_1, window_bounds = array<i64: 1, 8, 256>}, {transform_indices = @transform_2, window_bounds = array<i64: 1, 8, 32>}, {pipeline_mode = #tpu.pipeline_mode<synchronous>, transform_indices = @transform_3, window_bounds = array<i64: 1, 32>}, {pipeline_mode = #tpu.pipeline_mode<synchronous>, transform_indices = @transform_4, window_bounds = array<i64: 1, 32>}, {pipeline_mode = #tpu.pipeline_mode<synchronous>, transform_indices = @transform_5, window_bounds = array<i64: 32, 32>}, {pipeline_mode = #tpu.pipeline_mode<synchronous>, transform_indices = @transform_6, window_bounds = array<i64: 1, 32>}, {pipeline_mode = #tpu.pipeline_mode<synchronous>, transform_indices = @transform_7, window_bounds = array<i64: 1, 32>}, {pipeline_mode = #tpu.pipeline_mode<synchronous>, transform_indices = @transform_8, window_bounds = array<i64: 1, 32>}, {pipeline_mode = #tpu.pipeline_mode<synchronous>, transform_indices = @transform_9, window_bounds = array<i64: 32, 32>}, {pipeline_mode = #tpu.pipeline_mode<synchronous>, transform_indices = @transform_10, window_bounds = array<i64: 1, 32>}, {pipeline_mode = #tpu.pipeline_mode<synchronous>, transform_indices = @transform_11, window_bounds = array<i64: 32, 32>}, {pipeline_mode = #tpu.pipeline_mode<synchronous>, transform_indices = @transform_12, window_bounds = array<i64: 1, 32>}, {pipeline_mode = #tpu.pipeline_mode<synchronous>, transform_indices = @transform_13, window_bounds = array<i64: 32, 16>}, {pipeline_mode = #tpu.pipeline_mode<synchronous>, transform_indices = @transform_14, window_bounds = array<i64: 1, 16>}, {transform_indices = @transform_15, window_bounds = array<i64: 1, 8, 32>}, {transform_indices = @transform_16, window_bounds = array<i64: 1, 8, 16>}]} {
    %c0_i32 = arith.constant 0 : i32
    %0 = arith.cmpi eq, %arg1, %c0_i32 : i32
    %1 = arith.extui %0 : i1 to i32
    %c0_i32_0 = arith.constant 0 : i32
    %2 = arith.cmpi ne, %1, %c0_i32_0 : i32
    scf.if %2 {
      %cst_18 = arith.constant 0.000000e+00 : f32
      %26 = vector.broadcast %cst_18 : f32 to vector<8x32xf32>
      %c0_19 = arith.constant 0 : index
      %c0_20 = arith.constant 0 : index
      %27 = vector.load %arg19[%c0_19, %c0_20] : memref<8x32xf32, #tpu.memory_space<vmem>>, vector<8x32xf32>
      tpu.vector_store %arg19[%c0_19, %c0_20], %26 {strides = array<i32>} : memref<8x32xf32, #tpu.memory_space<vmem>>, vector<8x32xf32>,
      %cst_21 = arith.constant 0.000000e+00 : f32
      %28 = vector.broadcast %cst_21 : f32 to vector<8x1xf32>
      %c0_22 = arith.constant 0 : index
      %c0_23 = arith.constant 0 : index
      %29 = vector.load %arg20[%c0_22, %c0_23] : memref<8x1xf32, #tpu.memory_space<vmem>>, vector<8x1xf32>
      tpu.vector_store %arg20[%c0_22, %c0_23], %28 {strides = array<i32>} : memref<8x1xf32, #tpu.memory_space<vmem>>, vector<8x1xf32>,
    } else {
    }
    %c0 = arith.constant 0 : index
    %c0_1 = arith.constant 0 : index
    %c0_2 = arith.constant 0 : index
    %3 = vector.load %arg3[%c0, %c0_1, %c0_2] : memref<1x8x256xbf16, #tpu.memory_space<vmem>>, vector<1x8x256xbf16>
    %4 = vector.shape_cast %3 : vector<1x8x256xbf16> to vector<8x256xbf16>
    %cst = arith.constant 0.000000e+00 : bf16
    %5 = vector.broadcast %cst : bf16 to vector<8x256xbf16>
    %6 = arith.cmpf ogt, %4, %5 : vector<8x256xbf16>
    %7 = arith.extui %6 : vector<8x256xi1> to vector<8x256xi32>
    %8 = arith.sitofp %7 : vector<8x256xi32> to vector<8x256xf32>
    %9 = arith.truncf %8 : vector<8x256xf32> to vector<8x256xbf16>
    %c0_3 = arith.constant 0 : index
    %c0_4 = arith.constant 0 : index
    %10 = vector.load %arg20[%c0_3, %c0_4] : memref<8x1xf32, #tpu.memory_space<vmem>>, vector<8x1xf32>
    %11 = arith.extui %6 : vector<8x256xi1> to vector<8x256xi32>
    %12 = arith.sitofp %11 : vector<8x256xi32> to vector<8x256xf32>
    %cst_5 = arith.constant dense<0.000000e+00> : vector<8xf32>
    %13 = vector.multi_reduction <add>, %12, %cst_5 [1] : vector<8x256xf32> to vector<8xf32>
    %14 = vector.shape_cast %13 : vector<8xf32> to vector<8x1xf32>
    %15 = arith.addf %10, %14 : vector<8x1xf32>
    %c0_6 = arith.constant 0 : index
    %c0_7 = arith.constant 0 : index
    %16 = vector.load %arg20[%c0_6, %c0_7] : memref<8x1xf32, #tpu.memory_space<vmem>>, vector<8x1xf32>
    tpu.vector_store %arg20[%c0_6, %c0_7], %15 {strides = array<i32>} : memref<8x1xf32, #tpu.memory_space<vmem>>, vector<8x1xf32>,
    %c0_8 = arith.constant 0 : index
    %c0_9 = arith.constant 0 : index
    %17 = vector.load %arg19[%c0_8, %c0_9] : memref<8x32xf32, #tpu.memory_space<vmem>>, vector<8x32xf32>
    %c0_10 = arith.constant 0 : index
    %c0_11 = arith.constant 0 : index
    %c0_12 = arith.constant 0 : index
    %18 = vector.load %arg2[%c0_10, %c0_11, %c0_12] : memref<1x32x256xbf16, #tpu.memory_space<vmem>>, vector<1x32x256xbf16>
    %19 = vector.shape_cast %18 : vector<1x32x256xbf16> to vector<32x256xbf16>
    %cst_13 = arith.constant dense<0.000000e+00> : vector<8x32xf32>
    %20 = tpu.matmul %9, %19, %cst_13 {dimension_numbers = #tpu.dot_dimension_numbers<[1], [1], [0], [0], [0, 0, 1, 0], [], []>} : vector<8x256xbf16>, vector<32x256xbf16>, vector<8x32xf32> -> vector<8x32xf32>
    %21 = arith.addf %17, %20 : vector<8x32xf32>
    %c0_14 = arith.constant 0 : index
    %c0_15 = arith.constant 0 : index
    %22 = vector.load %arg19[%c0_14, %c0_15] : memref<8x32xf32, #tpu.memory_space<vmem>>, vector<8x32xf32>
    tpu.vector_store %arg19[%c0_14, %c0_15], %21 {strides = array<i32>} : memref<8x32xf32, #tpu.memory_space<vmem>>, vector<8x32xf32>,
    %c0_i32_16 = arith.constant 0 : i32
    %23 = arith.cmpi eq, %arg1, %c0_i32_16 : i32
    %24 = arith.extui %23 : i1 to i32
    %c0_i32_17 = arith.constant 0 : i32
    %25 = arith.cmpi ne, %24, %c0_i32_17 : i32
    scf.if %25 {
      %c0_18 = arith.constant 0 : index
      %c0_19 = arith.constant 0 : index
      %26 = vector.load %arg20[%c0_18, %c0_19] : memref<8x1xf32, #tpu.memory_space<vmem>>, vector<8x1xf32>
      %cst_20 = arith.constant 9.99999993E-9 : f32
      %27 = vector.broadcast %cst_20 : f32 to vector<8x1xf32>
      %28 = arith.addf %26, %27 : vector<8x1xf32>
      %29 = tpu.reciprocal %28 {approx = true} : vector<8x1xf32> -> vector<8x1xf32>
      %c0_21 = arith.constant 0 : index
      %c0_22 = arith.constant 0 : index
      %30 = vector.load %arg19[%c0_21, %c0_22] : memref<8x32xf32, #tpu.memory_space<vmem>>, vector<8x32xf32>
      %31 = vector.broadcast %29 : vector<8x1xf32> to vector<8x32xf32>
      %32 = arith.mulf %30, %31 : vector<8x32xf32>
      %c0_23 = arith.constant 0 : index
      %c0_24 = arith.constant 0 : index
      %33 = vector.load %arg5[%c0_23, %c0_24] : memref<1x32xf32, #tpu.memory_space<vmem>>, vector<1x32xf32>
      %c0_25 = arith.constant 0 : index
      %c0_26 = arith.constant 0 : index
      %34 = vector.load %arg6[%c0_25, %c0_26] : memref<1x32xf32, #tpu.memory_space<vmem>>, vector<1x32xf32>
      %cst_27 = arith.constant dense<0.000000e+00> : vector<8xf32>
      %35 = vector.multi_reduction <add>, %32, %cst_27 [1] : vector<8x32xf32> to vector<8xf32>
      %36 = vector.shape_cast %35 : vector<8xf32> to vector<8x1xf32>
      %cst_28 = arith.constant 3.200000e+01 : f32
      %37 = vector.broadcast %cst_28 : f32 to vector<8x1xf32>
      %38 = arith.divf %36, %37 : vector<8x1xf32>
      %39 = vector.broadcast %38 : vector<8x1xf32> to vector<8x32xf32>
      %40 = arith.subf %32, %39 : vector<8x32xf32>
      %41 = arith.mulf %40, %40 : vector<8x32xf32>
      %cst_29 = arith.constant dense<0.000000e+00> : vector<8xf32>
      %42 = vector.multi_reduction <add>, %41, %cst_29 [1] : vector<8x32xf32> to vector<8xf32>
      %43 = vector.shape_cast %42 : vector<8xf32> to vector<8x1xf32>
      %cst_30 = arith.constant 3.200000e+01 : f32
      %44 = vector.broadcast %cst_30 : f32 to vector<8x1xf32>
      %45 = arith.divf %43, %44 : vector<8x1xf32>
      %cst_31 = arith.constant 9.99999974E-6 : f32
      %46 = vector.broadcast %cst_31 : f32 to vector<8x1xf32>
      %47 = arith.addf %45, %46 : vector<8x1xf32>
      %48 = math.rsqrt %47 : vector<8x1xf32>
      %49 = vector.broadcast %48 : vector<8x1xf32> to vector<8x32xf32>
      %50 = arith.mulf %40, %49 : vector<8x32xf32>
      %51 = vector.broadcast %33 : vector<1x32xf32> to vector<8x32xf32>
      %52 = arith.mulf %50, %51 : vector<8x32xf32>
      %53 = vector.broadcast %34 : vector<1x32xf32> to vector<8x32xf32>
      %54 = arith.addf %52, %53 : vector<8x32xf32>
      %c0_32 = arith.constant 0 : index
      %c0_33 = arith.constant 0 : index
      %55 = vector.load %arg7[%c0_32, %c0_33] : memref<32x32xf32, #tpu.memory_space<vmem>>, vector<32x32xf32>
      %cst_34 = arith.constant dense<0.000000e+00> : vector<8x32xf32>
      %56 = tpu.matmul %54, %55, %cst_34 {dimension_numbers = #tpu.dot_dimension_numbers<[1], [0], [0], [1], [0, 0, 1, 1], [], []>} : vector<8x32xf32>, vector<32x32xf32>, vector<8x32xf32> -> vector<8x32xf32>
      %c0_35 = arith.constant 0 : index
      %c0_36 = arith.constant 0 : index
      %57 = vector.load %arg8[%c0_35, %c0_36] : memref<1x32xf32, #tpu.memory_space<vmem>>, vector<1x32xf32>
      %58 = vector.broadcast %57 : vector<1x32xf32> to vector<8x32xf32>
      %59 = arith.addf %56, %58 : vector<8x32xf32>
      %c0_37 = arith.constant 0 : index
      %c0_38 = arith.constant 0 : index
      %c0_39 = arith.constant 0 : index
      %60 = vector.load %arg4[%c0_37, %c0_38, %c0_39] : memref<1x8x32xf32, #tpu.memory_space<vmem>>, vector<1x8x32xf32>
      %61 = vector.shape_cast %60 : vector<1x8x32xf32> to vector<8x32xf32>
      %62 = arith.addf %59, %61 : vector<8x32xf32>
      %c0_40 = arith.constant 0 : index
      %c0_41 = arith.constant 0 : index
      %c0_42 = arith.constant 0 : index
      %63 = vector.load %arg17[%c0_40, %c0_41, %c0_42] : memref<1x8x32xf32, #tpu.memory_space<vmem>>, vector<1x8x32xf32>
      %64 = vector.shape_cast %63 : vector<1x8x32xf32> to vector<8x32xf32>
      %65 = vector.shape_cast %62 : vector<8x32xf32> to vector<1x8x32xf32>
      tpu.vector_store %arg17[%c0_40, %c0_41, %c0_42], %65 {strides = array<i32>} : memref<1x8x32xf32, #tpu.memory_space<vmem>>, vector<1x8x32xf32>,
      %c0_43 = arith.constant 0 : index
      %c0_44 = arith.constant 0 : index
      %66 = vector.load %arg9[%c0_43, %c0_44] : memref<1x32xf32, #tpu.memory_space<vmem>>, vector<1x32xf32>
      %c0_45 = arith.constant 0 : index
      %c0_46 = arith.constant 0 : index
      %67 = vector.load %arg10[%c0_45, %c0_46] : memref<1x32xf32, #tpu.memory_space<vmem>>, vector<1x32xf32>
      %cst_47 = arith.constant dense<0.000000e+00> : vector<8xf32>
      %68 = vector.multi_reduction <add>, %62, %cst_47 [1] : vector<8x32xf32> to vector<8xf32>
      %69 = vector.shape_cast %68 : vector<8xf32> to vector<8x1xf32>
      %cst_48 = arith.constant 3.200000e+01 : f32
      %70 = vector.broadcast %cst_48 : f32 to vector<8x1xf32>
      %71 = arith.divf %69, %70 : vector<8x1xf32>
      %72 = vector.broadcast %71 : vector<8x1xf32> to vector<8x32xf32>
      %73 = arith.subf %62, %72 : vector<8x32xf32>
      %74 = arith.mulf %73, %73 : vector<8x32xf32>
      %cst_49 = arith.constant dense<0.000000e+00> : vector<8xf32>
      %75 = vector.multi_reduction <add>, %74, %cst_49 [1] : vector<8x32xf32> to vector<8xf32>
      %76 = vector.shape_cast %75 : vector<8xf32> to vector<8x1xf32>
      %cst_50 = arith.constant 3.200000e+01 : f32
      %77 = vector.broadcast %cst_50 : f32 to vector<8x1xf32>
      %78 = arith.divf %76, %77 : vector<8x1xf32>
      %cst_51 = arith.constant 9.99999974E-6 : f32
      %79 = vector.broadcast %cst_51 : f32 to vector<8x1xf32>
      %80 = arith.addf %78, %79 : vector<8x1xf32>
      %81 = math.rsqrt %80 : vector<8x1xf32>
      %82 = vector.broadcast %81 : vector<8x1xf32> to vector<8x32xf32>
      %83 = arith.mulf %73, %82 : vector<8x32xf32>
      %84 = vector.broadcast %66 : vector<1x32xf32> to vector<8x32xf32>
      %85 = arith.mulf %83, %84 : vector<8x32xf32>
      %86 = vector.broadcast %67 : vector<1x32xf32> to vector<8x32xf32>
      %87 = arith.addf %85, %86 : vector<8x32xf32>
      %c0_52 = arith.constant 0 : index
      %c0_53 = arith.constant 0 : index
      %88 = vector.load %arg11[%c0_52, %c0_53] : memref<32x32xf32, #tpu.memory_space<vmem>>, vector<32x32xf32>
      %cst_54 = arith.constant dense<0.000000e+00> : vector<8x32xf32>
      %89 = tpu.matmul %87, %88, %cst_54 {dimension_numbers = #tpu.dot_dimension_numbers<[1], [0], [0], [1], [0, 0, 1, 1], [], []>} : vector<8x32xf32>, vector<32x32xf32>, vector<8x32xf32> -> vector<8x32xf32>
      %c0_55 = arith.constant 0 : index
      %c0_56 = arith.constant 0 : index
      %90 = vector.load %arg12[%c0_55, %c0_56] : memref<1x32xf32, #tpu.memory_space<vmem>>, vector<1x32xf32>
      %91 = vector.broadcast %90 : vector<1x32xf32> to vector<8x32xf32>
      %92 = arith.addf %89, %91 : vector<8x32xf32>
      %cst_57 = arith.constant 0.000000e+00 : f32
      %93 = vector.broadcast %cst_57 : f32 to vector<8x32xf32>
      %94 = arith.maximumf %92, %93 : vector<8x32xf32>
      %c0_58 = arith.constant 0 : index
      %c0_59 = arith.constant 0 : index
      %95 = vector.load %arg13[%c0_58, %c0_59] : memref<32x32xf32, #tpu.memory_space<vmem>>, vector<32x32xf32>
      %cst_60 = arith.constant dense<0.000000e+00> : vector<8x32xf32>
      %96 = tpu.matmul %94, %95, %cst_60 {dimension_numbers = #tpu.dot_dimension_numbers<[1], [0], [0], [1], [0, 0, 1, 1], [], []>} : vector<8x32xf32>, vector<32x32xf32>, vector<8x32xf32> -> vector<8x32xf32>
      %c0_61 = arith.constant 0 : index
      %c0_62 = arith.constant 0 : index
      %97 = vector.load %arg14[%c0_61, %c0_62] : memref<1x32xf32, #tpu.memory_space<vmem>>, vector<1x32xf32>
      %98 = vector.broadcast %97 : vector<1x32xf32> to vector<8x32xf32>
      %99 = arith.addf %96, %98 : vector<8x32xf32>
      %cst_63 = arith.constant 0.000000e+00 : f32
      %100 = vector.broadcast %cst_63 : f32 to vector<8x32xf32>
      %101 = arith.maximumf %99, %100 : vector<8x32xf32>
      %c0_64 = arith.constant 0 : index
      %c0_65 = arith.constant 0 : index
      %102 = vector.load %arg15[%c0_64, %c0_65] : memref<32x16xf32, #tpu.memory_space<vmem>>, vector<32x16xf32>
      %cst_66 = arith.constant dense<0.000000e+00> : vector<8x16xf32>
      %103 = tpu.matmul %101, %102, %cst_66 {dimension_numbers = #tpu.dot_dimension_numbers<[1], [0], [0], [1], [0, 0, 1, 1], [], []>} : vector<8x32xf32>, vector<32x16xf32>, vector<8x16xf32> -> vector<8x16xf32>
      %c0_67 = arith.constant 0 : index
      %c0_68 = arith.constant 0 : index
      %104 = vector.load %arg16[%c0_67, %c0_68] : memref<1x16xf32, #tpu.memory_space<vmem>>, vector<1x16xf32>
      %105 = vector.broadcast %104 : vector<1x16xf32> to vector<8x16xf32>
      %106 = arith.addf %103, %105 : vector<8x16xf32>
      %c0_69 = arith.constant 0 : index
      %c0_70 = arith.constant 0 : index
      %c0_71 = arith.constant 0 : index
      %107 = vector.load %arg18[%c0_69, %c0_70, %c0_71] : memref<1x8x16xf32, #tpu.memory_space<vmem>>, vector<1x8x16xf32>
      %108 = vector.shape_cast %107 : vector<1x8x16xf32> to vector<8x16xf32>
      %109 = vector.shape_cast %106 : vector<8x16xf32> to vector<1x8x16xf32>
      tpu.vector_store %arg18[%c0_69, %c0_70, %c0_71], %109 {strides = array<i32>} : memref<1x8x16xf32, #tpu.memory_space<vmem>>, vector<1x8x16xf32>,
    } else {
    }
    return
  }
  func.func @transform_0(%arg0: i32, %arg1: i32) -> (i32, i32, i32) {
    %c0_i32 = arith.constant 0 : i32
    %c0_i32_0 = arith.constant 0 : i32
    return %arg0, %c0_i32, %arg1 : i32, i32, i32
  }
  func.func @transform_1(%arg0: i32, %arg1: i32) -> (i32, i32, i32) {
    %c0_i32 = arith.constant 0 : i32
    %c0_i32_0 = arith.constant 0 : i32
    return %arg0, %c0_i32, %arg1 : i32, i32, i32
  }
  func.func @transform_2(%arg0: i32, %arg1: i32) -> (i32, i32, i32) {
    %c0_i32 = arith.constant 0 : i32
    %c0_i32_0 = arith.constant 0 : i32
    %c0_i32_1 = arith.constant 0 : i32
    return %arg0, %c0_i32, %c0_i32_0 : i32, i32, i32
  }
  func.func @transform_3(%arg0: i32, %arg1: i32) -> (i32, i32) {
    %c0_i32 = arith.constant 0 : i32
    %c0_i32_0 = arith.constant 0 : i32
    %c0_i32_1 = arith.constant 0 : i32
    return %c0_i32, %c0_i32_0 : i32, i32
  }
  func.func @transform_4(%arg0: i32, %arg1: i32) -> (i32, i32) {
    %c0_i32 = arith.constant 0 : i32
    %c0_i32_0 = arith.constant 0 : i32
    %c0_i32_1 = arith.constant 0 : i32
    return %c0_i32, %c0_i32_0 : i32, i32
  }
  func.func @transform_5(%arg0: i32, %arg1: i32) -> (i32, i32) {
    %c0_i32 = arith.constant 0 : i32
    %c0_i32_0 = arith.constant 0 : i32
    %c0_i32_1 = arith.constant 0 : i32
    return %c0_i32, %c0_i32_0 : i32, i32
  }
  func.func @transform_6(%arg0: i32, %arg1: i32) -> (i32, i32) {
    %c0_i32 = arith.constant 0 : i32
    %c0_i32_0 = arith.constant 0 : i32
    %c0_i32_1 = arith.constant 0 : i32
    return %c0_i32, %c0_i32_0 : i32, i32
  }
  func.func @transform_7(%arg0: i32, %arg1: i32) -> (i32, i32) {
    %c0_i32 = arith.constant 0 : i32
    %c0_i32_0 = arith.constant 0 : i32
    %c0_i32_1 = arith.constant 0 : i32
    return %c0_i32, %c0_i32_0 : i32, i32
  }
  func.func @transform_8(%arg0: i32, %arg1: i32) -> (i32, i32) {
    %c0_i32 = arith.constant 0 : i32
    %c0_i32_0 = arith.constant 0 : i32
    %c0_i32_1 = arith.constant 0 : i32
    return %c0_i32, %c0_i32_0 : i32, i32
  }
  func.func @transform_9(%arg0: i32, %arg1: i32) -> (i32, i32) {
    %c0_i32 = arith.constant 0 : i32
    %c0_i32_0 = arith.constant 0 : i32
    %c0_i32_1 = arith.constant 0 : i32
    return %c0_i32, %c0_i32_0 : i32, i32
  }
  func.func @transform_10(%arg0: i32, %arg1: i32) -> (i32, i32) {
    %c0_i32 = arith.constant 0 : i32
    %c0_i32_0 = arith.constant 0 : i32
    %c0_i32_1 = arith.constant 0 : i32
    return %c0_i32, %c0_i32_0 : i32, i32
  }
  func.func @transform_11(%arg0: i32, %arg1: i32) -> (i32, i32) {
    %c0_i32 = arith.constant 0 : i32
    %c0_i32_0 = arith.constant 0 : i32
    %c0_i32_1 = arith.constant 0 : i32
    return %c0_i32, %c0_i32_0 : i32, i32
  }
  func.func @transform_12(%arg0: i32, %arg1: i32) -> (i32, i32) {
    %c0_i32 = arith.constant 0 : i32
    %c0_i32_0 = arith.constant 0 : i32
    %c0_i32_1 = arith.constant 0 : i32
    return %c0_i32, %c0_i32_0 : i32, i32
  }
  func.func @transform_13(%arg0: i32, %arg1: i32) -> (i32, i32) {
    %c0_i32 = arith.constant 0 : i32
    %c0_i32_0 = arith.constant 0 : i32
    %c0_i32_1 = arith.constant 0 : i32
    return %c0_i32, %c0_i32_0 : i32, i32
  }
  func.func @transform_14(%arg0: i32, %arg1: i32) -> (i32, i32) {
    %c0_i32 = arith.constant 0 : i32
    %c0_i32_0 = arith.constant 0 : i32
    %c0_i32_1 = arith.constant 0 : i32
    return %c0_i32, %c0_i32_0 : i32, i32
  }
  func.func @transform_15(%arg0: i32, %arg1: i32) -> (i32, i32, i32) {
    %c0_i32 = arith.constant 0 : i32
    %c0_i32_0 = arith.constant 0 : i32
    %c0_i32_1 = arith.constant 0 : i32
    return %arg0, %c0_i32, %c0_i32_0 : i32, i32, i32
  }
  func.func @transform_16(%arg0: i32, %arg1: i32) -> (i32, i32, i32) {
    %c0_i32 = arith.constant 0 : i32
    %c0_i32_0 = arith.constant 0 : i32
    %c0_i32_1 = arith.constant 0 : i32
    return %arg0, %c0_i32, %c0_i32_0 : i32, i32, i32
  }
}

</mosaic_0001>

<llo_original>
// kernel: tpu_custom_call.1
$region0: #{tpu_custom_call.1}
  #allocation0 [shape = 'u32[]', space=smem, size = 0x4, offset = 0x4, fixed_abs, tag = 'smem constant byte address 0x4 - core index']
  #allocation1 [shape = 'u32[72,128]{1,0:T(1,128)}', space=vmem, size = 0x9000, scoped, tag = 'internal scratch']
  #allocation2 [shape = 'f32[8,32]{1,0:T(8,128)}', space=vmem, size = 0x1000, scoped, tag = 'scratch operand']
  #allocation3 [shape = 'f32[8,1]{1,0:T(8,128)}', space=vmem, size = 0x1000, scoped, tag = 'scratch operand']
  %s0 = inlined_call_operand.hbm [shape: bf16[2,32,256], index: 0, kind: input, shape index: {}]
  %s1 = inlined_call_operand.vmem [shape: bf16[2,8,256], index: 1, kind: input, shape index: {}]
  %s2 = inlined_call_operand.hbm [shape: f32[2,8,32], index: 2, kind: input, shape index: {}]
  %s3 = inlined_call_operand.vmem [shape: f32[1,32], index: 3, kind: input, shape index: {}]
  %s4 = inlined_call_operand.vmem [shape: f32[1,32], index: 4, kind: input, shape index: {}]
  %s5 = inlined_call_operand.vmem [shape: f32[32,32], index: 5, kind: input, shape index: {}]
  %s6 = inlined_call_operand.vmem [shape: f32[1,32], index: 6, kind: input, shape index: {}]
  %s7 = inlined_call_operand.vmem [shape: f32[1,32], index: 7, kind: input, shape index: {}]
  %s8 = inlined_call_operand.vmem [shape: f32[1,32], index: 8, kind: input, shape index: {}]
  %s9 = inlined_call_operand.hbm [shape: f32[32,32], index: 9, kind: input, shape index: {}]
  %s10 = inlined_call_operand.vmem [shape: f32[1,32], index: 10, kind: input, shape index: {}]
  %s11 = inlined_call_operand.hbm [shape: f32[32,32], index: 11, kind: input, shape index: {}]
  %s12 = inlined_call_operand.vmem [shape: f32[1,32], index: 12, kind: input, shape index: {}]
  %s13 = inlined_call_operand.vmem [shape: f32[32,16], index: 13, kind: input, shape index: {}]
  %s14 = inlined_call_operand.vmem [shape: f32[1,16], index: 14, kind: input, shape index: {}]
  %s15 = inlined_call_operand.hbm [shape: f32[2,8,32], index: 15, kind: output, shape index: {0}]
  %s16 = inlined_call_operand.hbm [shape: f32[2,8,16], index: 16, kind: output, shape index: {1}]
  %17 = xla_tuple %s15, %s16
  %s18 = sld [smem:[#allocation0]]
  $region125: #{tpu_custom_call.1} parent=0
    _
  %s20 = ssub.s32 1, %s18
  %s21 = scalar_select 0, %s20, %s18
  $region1: #{tpu_custom_call.1} parent=0
    #allocation4 [shape = 'u8[32768]{0}', space=vmem, size = 0x8000, scoped, tag = 'input window, operand 0']
    #allocation5 [shape = 's32[2]{0}', space=sflag, size = 0x8, scoped, tag = 'scoped memory for tpu_custom_call.1']
    #allocation6 [shape = 's32[2]{0}', space=sflag, size = 0x8, scoped, tag = 'scoped memory for tpu_custom_call.1']
    #allocation7 [shape = 'u8[8192]{0}', space=vmem, size = 0x2000, scoped, tag = 'input window, operand 2']
    #allocation8 [shape = 's32[2]{0}', space=sflag, size = 0x8, scoped, tag = 'scoped memory for tpu_custom_call.1']
    #allocation9 [shape = 'u8[16384]{0}', space=vmem, size = 0x4000, scoped, tag = 'input window, operand 9, single buffered']
    #allocation10 [shape = 'u8[16384]{0}', space=vmem, size = 0x4000, scoped, tag = 'input window, operand 11, single buffered']
    #allocation11 [shape = 's32[1]{0}', space=sflag, size = 0x4, scoped, tag = 'scoped memory for tpu_custom_call.1']
    #allocation12 [shape = 'u8[8192]{0}', space=vmem, size = 0x2000, scoped, tag = 'output window, operand 0']
    #allocation13 [shape = 'u8[8192]{0}', space=vmem, size = 0x2000, scoped, tag = 'output window, operand 1']
    #allocation14 [shape = 's32[2]{0}', space=sflag, size = 0x8, scoped, tag = 'scoped memory for tpu_custom_call.1']
    %22 = vsyncpa [#allocation5], 0
    %s23 = scalar_lea.sflag [#allocation5], 1
    %24 = vsyncpa %s23, 0
    %25 = vsyncpa [#allocation8], 0
    %s26 = scalar_lea.sflag [#allocation8], 1
    %27 = vsyncpa %s26, 0
    %28 = vsyncpa [#allocation11], 0
    %29 = vsyncpa [#allocation6], 0
    %s30 = scalar_lea.sflag [#allocation6], 1
    %31 = vsyncpa %s30, 0
    %32 = vsyncpa [#allocation14], 0
    %s33 = scalar_lea.sflag [#allocation14], 1
    %34 = vsyncpa %s33, 0
    loop: start=0, step=1, limit=4
    $region2: #{tpu_custom_call.1} parent=1 // loop_pre_header
      _
    $region3: #{tpu_custom_call.1} parent=1 // loop_header
      %s36 = sphi 0, %s40
      %p37 = scmp.ge.s32.totalorder %s36, 4
      %s43 = sphi 0, %s55
      %s44 = sphi 0, %s51
      %s45 = sphi 0, %s43
      %s46 = sphi 0, %s44
      %s47 = sphi 0, %s45
      %s48 = sphi 0, %s46
      %s60 = sphi 0, %s62
      %s63 = sphi 0, %s60
      %s64 = sphi 0, %s63
      %s80 = sphi 0, %s64
      %s88 = sphi 0, %s90
      %s91 = sphi 0, %s88
      %s92 = sphi 0, %s91
      %s108 = sphi 0, %s92
      %s114 = sphi 0, %s116
      %s117 = sphi 0, %s114
      %s118 = sphi 0, %s117
      %s134 = sphi 0, %s118
      %s138 = sphi 0, %s138
      %s140 = sphi 0, %s138
      %s141 = sphi 0, %s140
      %s155 = sphi 0, %s141
      %s159 = sphi 0, %s159
      %s161 = sphi 0, %s159
      %s162 = sphi 0, %s161
      %s176 = sphi 0, %s162
      %s180 = sphi 0, %s180
      %s182 = sphi 0, %s180
      %s183 = sphi 0, %s182
      %s197 = sphi 0, %s183
      %s201 = sphi 0, %s201
      %s203 = sphi 0, %s201
      %s204 = sphi 0, %s203
      %s218 = sphi 0, %s204
      %s222 = sphi 0, %s222
      %s224 = sphi 0, %s222
      %s225 = sphi 0, %s224
      %s239 = sphi 0, %s225
      %s243 = sphi 0, %s243
      %s245 = sphi 0, %s243
      %s246 = sphi 0, %s245
      %s260 = sphi 0, %s246
      %s264 = sphi 0, %s264
      %s266 = sphi 0, %s264
      %s267 = sphi 0, %s266
      %s281 = sphi 0, %s267
      %s285 = sphi 0, %s285
      %s287 = sphi 0, %s285
      %s288 = sphi 0, %s287
      %s302 = sphi 0, %s288
      %s306 = sphi 0, %s306
      %s308 = sphi 0, %s306
      %s309 = sphi 0, %s308
      %s323 = sphi 0, %s309
      %s327 = sphi 0, %s327
      %s329 = sphi 0, %s327
      %s330 = sphi 0, %s329
      %s344 = sphi 0, %s330
      %s348 = sphi 0, %s348
      %s350 = sphi 0, %s348
      %s351 = sphi 0, %s350
      %s365 = sphi 0, %s351
      %s369 = sphi 0, %s369
      %s371 = sphi 0, %s369
      %s372 = sphi 0, %s371
      %s386 = sphi 0, %s372
      %s392 = sphi 0, %s394
      %s395 = sphi 0, %s392
      %s396 = sphi 0, %s395
      %s412 = sphi 0, %s396
      %s418 = sphi 0, %s420
      %s421 = sphi 0, %s418
      %s422 = sphi 0, %s421
      %s438 = sphi 0, %s422
    $region4: #{tpu_custom_call.1} parent=1 // loop_header_branch
      %39 = sbr.rel (%p37) target = $region8
    $region5: #{tpu_custom_call.1} parent=1 // loop_body
      %s41 = ssub.s32 %s36, 1
      %s42 = ssub.s32 %s36, 2
      %s49 = sadd.s32 1, %s44
      %p50 = scmp.ge.s32.totalorder %s49, 1
      %s51 = scalar_select %p50, 0, %s49
      %s52 = sadd.s32 1, %s43
      %s53 = scalar_select %p50, %s52, %s43
      %p54 = scmp.ge.s32.totalorder %s53, 2
      %s55 = scalar_select %p54, 0, %s53
      %s56 = ssub.s32 %s43, %s55
      %s57 = ssub.s32 %s44, %s51
      %s58 = sor.u32 %s56, %s57
      %p59 = scmp.eq.s32.totalorder %s58, 0
      %s61 = sadd.s32 %s60, 1
      %s62 = scalar_select %p59, %s60, %s61
      %p65 = pneg %p59
      %p66 = scmp.eq.s32.totalorder %s36, 1
      %p67 = por %p65, %p66
      %p68 = scmp.ne.s32.totalorder %s60, %s63
      %p69 = scmp.eq.s32.totalorder %s36, 0
      %p70 = por %p68, %p69
      %p71 = scmp.ne.s32.totalorder %s60, %s63
      %p72 = scmp.eq.s32.totalorder %s41, 1
      %p73 = por %p71, %p72
      %p74 = scmp.ne.s32.totalorder %s63, %s64
      %p75 = scmp.eq.s32.totalorder %s41, 0
      %p76 = por %p74, %p75
      %p77 = scmp.ne.s32.totalorder %s63, %s64
      %p78 = scmp.eq.s32.totalorder %s42, 1
      %p79 = por %p77, %p78
      %p81 = scmp.ne.s32.totalorder %s64, %s80
      %p82 = scmp.eq.s32.totalorder %s42, 0
      %p83 = por %p81, %p82
      %s84 = ssub.s32 %s43, %s55
      %s85 = ssub.s32 %s44, %s51
      %s86 = sor.u32 %s84, %s85
      %p87 = scmp.eq.s32.totalorder %s86, 0
      %s89 = sadd.s32 %s88, 1
      %s90 = scalar_select %p87, %s88, %s89
      %p93 = pneg %p87
      %p94 = scmp.eq.s32.totalorder %s36, 1
      %p95 = por %p93, %p94
      %p96 = scmp.ne.s32.totalorder %s88, %s91
      %p97 = scmp.eq.s32.totalorder %s36, 0
      %p98 = por %p96, %p97
      %p99 = scmp.ne.s32.totalorder %s88, %s91
      %p100 = scmp.eq.s32.totalorder %s41, 1
      %p101 = por %p99, %p100
      %p102 = scmp.ne.s32.totalorder %s91, %s92
      %p103 = scmp.eq.s32.totalorder %s41, 0
      %p104 = por %p102, %p103
      %p105 = scmp.ne.s32.totalorder %s91, %s92
      %p106 = scmp.eq.s32.totalorder %s42, 1
      %p107 = por %p105, %p106
      %p109 = scmp.ne.s32.totalorder %s92, %s108
      %p110 = scmp.eq.s32.totalorder %s42, 0
      %p111 = por %p109, %p110
      %s112 = ssub.s32 %s43, %s55
      %p113 = scmp.eq.s32.totalorder %s112, 0
      %s115 = sadd.s32 %s114, 1
      %s116 = scalar_select %p113, %s114, %s115
      %p119 = pneg %p113
      %p120 = scmp.eq.s32.totalorder %s36, 1
      %p121 = por %p119, %p120
      %p122 = scmp.ne.s32.totalorder %s114, %s117
      %p123 = scmp.eq.s32.totalorder %s36, 0
      %p124 = por %p122, %p123
      %p125 = scmp.ne.s32.totalorder %s114, %s117
      %p126 = scmp.eq.s32.totalorder %s41, 1
      %p127 = por %p125, %p126
      %p128 = scmp.ne.s32.totalorder %s117, %s118
      %p129 = scmp.eq.s32.totalorder %s41, 0
      %p130 = por %p128, %p129
      %p131 = scmp.ne.s32.totalorder %s117, %s118
      %p132 = scmp.eq.s32.totalorder %s42, 1
      %p133 = por %p131, %p132
      %p135 = scmp.ne.s32.totalorder %s118, %s134
      %p136 = scmp.eq.s32.totalorder %s42, 0
      %p137 = por %p135, %p136
      %s139 = sadd.s32 %s138, 1
      %p142 = scmp.eq.s32.totalorder %s36, 1
      %p143 = scmp.ne.s32.totalorder %s138, %s140
      %p144 = scmp.eq.s32.totalorder %s36, 0
      %p145 = por %p143, %p144
      %p146 = scmp.ne.s32.totalorder %s138, %s140
      %p147 = scmp.eq.s32.totalorder %s41, 1
      %p148 = por %p146, %p147
      %p149 = scmp.ne.s32.totalorder %s140, %s141
      %p150 = scmp.eq.s32.totalorder %s41, 0
      %p151 = por %p149, %p150
      %p152 = scmp.ne.s32.totalorder %s140, %s141
      %p153 = scmp.eq.s32.totalorder %s42, 1
      %p154 = por %p152, %p153
      %p156 = scmp.ne.s32.totalorder %s141, %s155
      %p157 = scmp.eq.s32.totalorder %s42, 0
      %p158 = por %p156, %p157
      %s160 = sadd.s32 %s159, 1
      %p163 = scmp.eq.s32.totalorder %s36, 1
      %p164 = scmp.ne.s32.totalorder %s159, %s161
      %p165 = scmp.eq.s32.totalorder %s36, 0
      %p166 = por %p164, %p165
      %p167 = scmp.ne.s32.totalorder %s159, %s161
      %p168 = scmp.eq.s32.totalorder %s41, 1
      %p169 = por %p167, %p168
      %p170 = scmp.ne.s32.totalorder %s161, %s162
      %p171 = scmp.eq.s32.totalorder %s41, 0
      %p172 = por %p170, %p171
      %p173 = scmp.ne.s32.totalorder %s161, %s162
      %p174 = scmp.eq.s32.totalorder %s42, 1
      %p175 = por %p173, %p174
      %p177 = scmp.ne.s32.totalorder %s162, %s176
      %p178 = scmp.eq.s32.totalorder %s42, 0
      %p179 = por %p177, %p178
      %s181 = sadd.s32 %s180, 1
      %p184 = scmp.eq.s32.totalorder %s36, 1
      %p185 = scmp.ne.s32.totalorder %s180, %s182
      %p186 = scmp.eq.s32.totalorder %s36, 0
      %p187 = por %p185, %p186
      %p188 = scmp.ne.s32.totalorder %s180, %s182
      %p189 = scmp.eq.s32.totalorder %s41, 1
      %p190 = por %p188, %p189
      %p191 = scmp.ne.s32.totalorder %s182, %s183
      %p192 = scmp.eq.s32.totalorder %s41, 0
      %p193 = por %p191, %p192
      %p194 = scmp.ne.s32.totalorder %s182, %s183
      %p195 = scmp.eq.s32.totalorder %s42, 1
      %p196 = por %p194, %p195
      %p198 = scmp.ne.s32.totalorder %s183, %s197
      %p199 = scmp.eq.s32.totalorder %s42, 0
      %p200 = por %p198, %p199
      %s202 = sadd.s32 %s201, 1
      %p205 = scmp.eq.s32.totalorder %s36, 1
      %p206 = scmp.ne.s32.totalorder %s201, %s203
      %p207 = scmp.eq.s32.totalorder %s36, 0
      %p208 = por %p206, %p207
      %p209 = scmp.ne.s32.totalorder %s201, %s203
      %p210 = scmp.eq.s32.totalorder %s41, 1
      %p211 = por %p209, %p210
      %p212 = scmp.ne.s32.totalorder %s203, %s204
      %p213 = scmp.eq.s32.totalorder %s41, 0
      %p214 = por %p212, %p213
      %p215 = scmp.ne.s32.totalorder %s203, %s204
      %p216 = scmp.eq.s32.totalorder %s42, 1
      %p217 = por %p215, %p216
      %p219 = scmp.ne.s32.totalorder %s204, %s218
      %p220 = scmp.eq.s32.totalorder %s42, 0
      %p221 = por %p219, %p220
      %s223 = sadd.s32 %s222, 1
      %p226 = scmp.eq.s32.totalorder %s36, 1
      %p227 = scmp.ne.s32.totalorder %s222, %s224
      %p228 = scmp.eq.s32.totalorder %s36, 0
      %p229 = por %p227, %p228
      %p230 = scmp.ne.s32.totalorder %s222, %s224
      %p231 = scmp.eq.s32.totalorder %s41, 1
      %p232 = por %p230, %p231
      %p233 = scmp.ne.s32.totalorder %s224, %s225
      %p234 = scmp.eq.s32.totalorder %s41, 0
      %p235 = por %p233, %p234
      %p236 = scmp.ne.s32.totalorder %s224, %s225
      %p237 = scmp.eq.s32.totalorder %s42, 1
      %p238 = por %p236, %p237
      %p240 = scmp.ne.s32.totalorder %s225, %s239
      %p241 = scmp.eq.s32.totalorder %s42, 0
      %p242 = por %p240, %p241
      %s244 = sadd.s32 %s243, 1
      %p247 = scmp.eq.s32.totalorder %s36, 1
      %p248 = scmp.ne.s32.totalorder %s243, %s245
      %p249 = scmp.eq.s32.totalorder %s36, 0
      %p250 = por %p248, %p249
      %p251 = scmp.ne.s32.totalorder %s243, %s245
      %p252 = scmp.eq.s32.totalorder %s41, 1
      %p253 = por %p251, %p252
      %p254 = scmp.ne.s32.totalorder %s245, %s246
      %p255 = scmp.eq.s32.totalorder %s41, 0
      %p256 = por %p254, %p255
      %p257 = scmp.ne.s32.totalorder %s245, %s246
      %p258 = scmp.eq.s32.totalorder %s42, 1
      %p259 = por %p257, %p258
      %p261 = scmp.ne.s32.totalorder %s246, %s260
      %p262 = scmp.eq.s32.totalorder %s42, 0
      %p263 = por %p261, %p262
      %s265 = sadd.s32 %s264, 1
      %p268 = scmp.eq.s32.totalorder %s36, 1
      %p269 = scmp.ne.s32.totalorder %s264, %s266
      %p270 = scmp.eq.s32.totalorder %s36, 0
      %p271 = por %p269, %p270
      %p272 = scmp.ne.s32.totalorder %s264, %s266
      %p273 = scmp.eq.s32.totalorder %s41, 1
      %p274 = por %p272, %p273
      %p275 = scmp.ne.s32.totalorder %s266, %s267
      %p276 = scmp.eq.s32.totalorder %s41, 0
      %p277 = por %p275, %p276
      %p278 = scmp.ne.s32.totalorder %s266, %s267
      %p279 = scmp.eq.s32.totalorder %s42, 1
      %p280 = por %p278, %p279
      %p282 = scmp.ne.s32.totalorder %s267, %s281
      %p283 = scmp.eq.s32.totalorder %s42, 0
      %p284 = por %p282, %p283
      %s286 = sadd.s32 %s285, 1
      %p289 = scmp.eq.s32.totalorder %s36, 1
      %p290 = scmp.ne.s32.totalorder %s285, %s287
      %p291 = scmp.eq.s32.totalorder %s36, 0
      %p292 = por %p290, %p291
      %p293 = scmp.ne.s32.totalorder %s285, %s287
      %p294 = scmp.eq.s32.totalorder %s41, 1
      %p295 = por %p293, %p294
      %p296 = scmp.ne.s32.totalorder %s287, %s288
      %p297 = scmp.eq.s32.totalorder %s41, 0
      %p298 = por %p296, %p297
      %p299 = scmp.ne.s32.totalorder %s287, %s288
      %p300 = scmp.eq.s32.totalorder %s42, 1
      %p301 = por %p299, %p300
      %p303 = scmp.ne.s32.totalorder %s288, %s302
      %p304 = scmp.eq.s32.totalorder %s42, 0
      %p305 = por %p303, %p304
      %s307 = sadd.s32 %s306, 1
      %p310 = scmp.eq.s32.totalorder %s36, 1
      %p311 = scmp.ne.s32.totalorder %s306, %s308
      %p312 = scmp.eq.s32.totalorder %s36, 0
      %p313 = por %p311, %p312
      %p314 = scmp.ne.s32.totalorder %s306, %s308
      %p315 = scmp.eq.s32.totalorder %s41, 1
      %p316 = por %p314, %p315
      %p317 = scmp.ne.s32.totalorder %s308, %s309
      %p318 = scmp.eq.s32.totalorder %s41, 0
      %p319 = por %p317, %p318
      %p320 = scmp.ne.s32.totalorder %s308, %s309
      %p321 = scmp.eq.s32.totalorder %s42, 1
      %p322 = por %p320, %p321
      %p324 = scmp.ne.s32.totalorder %s309, %s323
      %p325 = scmp.eq.s32.totalorder %s42, 0
      %p326 = por %p324, %p325
      %s328 = sadd.s32 %s327, 1
      %p331 = scmp.eq.s32.totalorder %s36, 1
      %p332 = scmp.ne.s32.totalorder %s327, %s329
      %p333 = scmp.eq.s32.totalorder %s36, 0
      %p334 = por %p332, %p333
      %p335 = scmp.ne.s32.totalorder %s327, %s329
      %p336 = scmp.eq.s32.totalorder %s41, 1
      %p337 = por %p335, %p336
      %p338 = scmp.ne.s32.totalorder %s329, %s330
      %p339 = scmp.eq.s32.totalorder %s41, 0
      %p340 = por %p338, %p339
      %p341 = scmp.ne.s32.totalorder %s329, %s330
      %p342 = scmp.eq.s32.totalorder %s42, 1
      %p343 = por %p341, %p342
      %p345 = scmp.ne.s32.totalorder %s330, %s344
      %p346 = scmp.eq.s32.totalorder %s42, 0
      %p347 = por %p345, %p346
      %s349 = sadd.s32 %s348, 1
      %p352 = scmp.eq.s32.totalorder %s36, 1
      %p353 = scmp.ne.s32.totalorder %s348, %s350
      %p354 = scmp.eq.s32.totalorder %s36, 0
      %p355 = por %p353, %p354
      %p356 = scmp.ne.s32.totalorder %s348, %s350
      %p357 = scmp.eq.s32.totalorder %s41, 1
      %p358 = por %p356, %p357
      %p359 = scmp.ne.s32.totalorder %s350, %s351
      %p360 = scmp.eq.s32.totalorder %s41, 0
      %p361 = por %p359, %p360
      %p362 = scmp.ne.s32.totalorder %s350, %s351
      %p363 = scmp.eq.s32.totalorder %s42, 1
      %p364 = por %p362, %p363
      %p366 = scmp.ne.s32.totalorder %s351, %s365
      %p367 = scmp.eq.s32.totalorder %s42, 0
      %p368 = por %p366, %p367
      %s370 = sadd.s32 %s369, 1
      %p373 = scmp.eq.s32.totalorder %s36, 1
      %p374 = scmp.ne.s32.totalorder %s369, %s371
      %p375 = scmp.eq.s32.totalorder %s36, 0
      %p376 = por %p374, %p375
      %p377 = scmp.ne.s32.totalorder %s369, %s371
      %p378 = scmp.eq.s32.totalorder %s41, 1
      %p379 = por %p377, %p378
      %p380 = scmp.ne.s32.totalorder %s371, %s372
      %p381 = scmp.eq.s32.totalorder %s41, 0
      %p382 = por %p380, %p381
      %p383 = scmp.ne.s32.totalorder %s371, %s372
      %p384 = scmp.eq.s32.totalorder %s42, 1
      %p385 = por %p383, %p384
      %p387 = scmp.ne.s32.totalorder %s372, %s386
      %p388 = scmp.eq.s32.totalorder %s42, 0
      %p389 = por %p387, %p388
      %s390 = ssub.s32 %s43, %s55
      %p391 = scmp.eq.s32.totalorder %s390, 0
      %s393 = sadd.s32 %s392, 1
      %s394 = scalar_select %p391, %s392, %s393
      %p397 = pneg %p391
      %p398 = scmp.eq.s32.totalorder %s36, 1
      %p399 = por %p397, %p398
      %p400 = scmp.ne.s32.totalorder %s392, %s395
      %p401 = scmp.eq.s32.totalorder %s36, 0
      %p402 = por %p400, %p401
      %p403 = scmp.ne.s32.totalorder %s392, %s395
      %p404 = scmp.eq.s32.totalorder %s41, 1
      %p405 = por %p403, %p404
      %p406 = scmp.ne.s32.totalorder %s395, %s396
      %p407 = scmp.eq.s32.totalorder %s41, 0
      %p408 = por %p406, %p407
      %p409 = scmp.ne.s32.totalorder %s395, %s396
      %p410 = scmp.eq.s32.totalorder %s42, 1
      %p411 = por %p409, %p410
      %p413 = scmp.ne.s32.totalorder %s396, %s412
      %p414 = scmp.eq.s32.totalorder %s42, 0
      %p415 = por %p413, %p414
      %s416 = ssub.s32 %s43, %s55
      %p417 = scmp.eq.s32.totalorder %s416, 0
      %s419 = sadd.s32 %s418, 1
      %s420 = scalar_select %p417, %s418, %s419
      %p423 = pneg %p417
      %p424 = scmp.eq.s32.totalorder %s36, 1
      %p425 = por %p423, %p424
      %p426 = scmp.ne.s32.totalorder %s418, %s421
      %p427 = scmp.eq.s32.totalorder %s36, 0
      %p428 = por %p426, %p427
      %p429 = scmp.ne.s32.totalorder %s418, %s421
      %p430 = scmp.eq.s32.totalorder %s41, 1
      %p431 = por %p429, %p430
      %p432 = scmp.ne.s32.totalorder %s421, %s422
      %p433 = scmp.eq.s32.totalorder %s41, 0
      %p434 = por %p432, %p433
      %p435 = scmp.ne.s32.totalorder %s421, %s422
      %p436 = scmp.eq.s32.totalorder %s42, 1
      %p437 = por %p435, %p436
      %p439 = scmp.ne.s32.totalorder %s422, %s438
      %p440 = scmp.eq.s32.totalorder %s42, 0
      %p441 = por %p439, %p440
      %p442 = scmp.le.s32.totalorder 1, %s36
      %p443 = scmp.lt.s32.totalorder %s36, 3
      %p444 = pnand %p442, %p443
      %p445 = pneg %p444
      // Predicated region
      $region9: #{tpu_custom_call.1} parent=5 // pred_check
        _
      $region10: #{tpu_custom_call.1} parent=5 // pred_check_branch
        %447 = sbr.rel (%p444) target = $region12
      $region11: #{tpu_custom_call.1} parent=5 // pred_region
        %s448 = ssub.s32 %s36, 1
        // Predicated region
        $region13: #{tpu_custom_call.1} parent=11 // pred_check
          %p449 = pneg %p151
        $region14: #{tpu_custom_call.1} parent=11 // pred_check_branch
          %451 = sbr.rel (%p449) target = $region16
        $region15: #{tpu_custom_call.1} parent=11 // pred_region
          _
        $region16: #{tpu_custom_call.1} parent=11 // pred_fallthru
          _
        // Predicated region
        $region17: #{tpu_custom_call.1} parent=11 // pred_check
          %p452 = pneg %p172
        $region18: #{tpu_custom_call.1} parent=11 // pred_check_branch
          %454 = sbr.rel (%p452) target = $region20
        $region19: #{tpu_custom_call.1} parent=11 // pred_region
          _
        $region20: #{tpu_custom_call.1} parent=11 // pred_fallthru
          _
        // Predicated region
        $region21: #{tpu_custom_call.1} parent=11 // pred_check
          %p455 = pneg %p193
        $region22: #{tpu_custom_call.1} parent=11 // pred_check_branch
          %457 = sbr.rel (%p455) target = $region24
        $region23: #{tpu_custom_call.1} parent=11 // pred_region
          _
        $region24: #{tpu_custom_call.1} parent=11 // pred_fallthru
          _
        // Predicated region
        $region25: #{tpu_custom_call.1} parent=11 // pred_check
          %p458 = pneg %p214
        $region26: #{tpu_custom_call.1} parent=11 // pred_check_branch
          %460 = sbr.rel (%p458) target = $region28
        $region27: #{tpu_custom_call.1} parent=11 // pred_region
          _
        $region28: #{tpu_custom_call.1} parent=11 // pred_fallthru
          _
        // Predicated region
        $region29: #{tpu_custom_call.1} parent=11 // pred_check
          %p461 = pneg %p235
        $region30: #{tpu_custom_call.1} parent=11 // pred_check_branch
          %463 = sbr.rel (%p461) target = $region32
        $region31: #{tpu_custom_call.1} parent=11 // pred_region
          _
        $region32: #{tpu_custom_call.1} parent=11 // pred_fallthru
          _
        // Predicated region
        $region33: #{tpu_custom_call.1} parent=11 // pred_check
          %p464 = pneg %p256
        $region34: #{tpu_custom_call.1} parent=11 // pred_check_branch
          %466 = sbr.rel (%p464) target = $region36
        $region35: #{tpu_custom_call.1} parent=11 // pred_region
          _
        $region36: #{tpu_custom_call.1} parent=11 // pred_fallthru
          _
        // Predicated region
        $region37: #{tpu_custom_call.1} parent=11 // pred_check
          %p467 = pneg %p277
        $region38: #{tpu_custom_call.1} parent=11 // pred_check_branch
          %469 = sbr.rel (%p467) target = $region40
        $region39: #{tpu_custom_call.1} parent=11 // pred_region
          %471 = vsyncadd [#allocation8], 0
          %s472 = sshll.u32 %s9, 4
          %s473 = int_to_ptr.hbm [resolvable:$true] %s472
          %s474 = sshll.u32 [#allocation9], 4
          %s475 = int_to_ptr.vmem [resolvable:$true] %s474
          %480 = dma.hbm_to_vmem [thread:$0]  %s473, 512, %s475, [#allocation8], 128, 128, 8
        $region40: #{tpu_custom_call.1} parent=11 // pred_fallthru
          _
        // Predicated region
        $region41: #{tpu_custom_call.1} parent=11 // pred_check
          %p481 = pneg %p298
        $region42: #{tpu_custom_call.1} parent=11 // pred_check_branch
          %483 = sbr.rel (%p481) target = $region44
        $region43: #{tpu_custom_call.1} parent=11 // pred_region
          _
        $region44: #{tpu_custom_call.1} parent=11 // pred_fallthru
          _
        // Predicated region
        $region45: #{tpu_custom_call.1} parent=11 // pred_check
          %p484 = pneg %p319
        $region46: #{tpu_custom_call.1} parent=11 // pred_check_branch
          %486 = sbr.rel (%p484) target = $region48
        $region47: #{tpu_custom_call.1} parent=11 // pred_region
          %488 = vsyncadd [#allocation11], 0
          %s489 = sshll.u32 %s11, 4
          %s490 = int_to_ptr.hbm [resolvable:$true] %s489
          %s491 = sshll.u32 [#allocation10], 4
          %s492 = int_to_ptr.vmem [resolvable:$true] %s491
          %497 = dma.hbm_to_vmem [thread:$0]  %s490, 512, %s492, [#allocation11], 128, 128, 8
        $region48: #{tpu_custom_call.1} parent=11 // pred_fallthru
          _
        // Predicated region
        $region49: #{tpu_custom_call.1} parent=11 // pred_check
          %p498 = pneg %p340
        $region50: #{tpu_custom_call.1} parent=11 // pred_check_branch
          %500 = sbr.rel (%p498) target = $region52
        $region51: #{tpu_custom_call.1} parent=11 // pred_region
          _
        $region52: #{tpu_custom_call.1} parent=11 // pred_fallthru
          _
        // Predicated region
        $region53: #{tpu_custom_call.1} parent=11 // pred_check
          %p501 = pneg %p361
        $region54: #{tpu_custom_call.1} parent=11 // pred_check_branch
          %503 = sbr.rel (%p501) target = $region56
        $region55: #{tpu_custom_call.1} parent=11 // pred_region
          _
        $region56: #{tpu_custom_call.1} parent=11 // pred_fallthru
          _
        // Predicated region
        $region57: #{tpu_custom_call.1} parent=11 // pred_check
          %p504 = pneg %p382
        $region58: #{tpu_custom_call.1} parent=11 // pred_check_branch
          %506 = sbr.rel (%p504) target = $region60
        $region59: #{tpu_custom_call.1} parent=11 // pred_region
          _
        $region60: #{tpu_custom_call.1} parent=11 // pred_fallthru
          _
      $region12: #{tpu_custom_call.1} parent=5 // pred_fallthru
        _
      %p507 = scmp.lt.s32.totalorder %s36, 2
      // Predicated region
      $region61: #{tpu_custom_call.1} parent=5 // pred_check
        %p508 = pneg %p507
      $region62: #{tpu_custom_call.1} parent=5 // pred_check_branch
        %510 = sbr.rel (%p508) target = $region64
      $region63: #{tpu_custom_call.1} parent=5 // pred_region
        // Predicated region
        $region65: #{tpu_custom_call.1} parent=63 // pred_check
          %p511 = pneg %p70
        $region66: #{tpu_custom_call.1} parent=63 // pred_check_branch
          %513 = sbr.rel (%p511) target = $region68
        $region67: #{tpu_custom_call.1} parent=63 // pred_region
          %s514 = sand.u32 %s60, 1
          %s515 = scalar_lea.sflag [#allocation5], %s514
          %s516 = sand.u32 %s60, 1
          %s517 = smul.addr %s516, 32
          %s518 = scalar_lea.vmem [#allocation4], %s517
          %s519 = smul.u32 2, %s44
          %521 = vsyncadd %s515, 0
          %s522 = smul.addr %s43, 8
          %s523 = sadd.s32 %s519, %s522
          %s524 = smul.addr %s523, 4
          %s525 = scalar_lea.hbm %s0, %s524
          %s526 = sshll.u32 %s525, 4
          %s527 = int_to_ptr.hbm [resolvable:$true] %s526
          %s528 = sshll.u32 %s518, 4
          %s529 = int_to_ptr.vmem [resolvable:$true] %s528
          %534 = dma.hbm_to_vmem [thread:$0]  %s527, 512, %s529, %s515, 128, 128, 8
        $region68: #{tpu_custom_call.1} parent=63 // pred_fallthru
          _
        // Predicated region
        $region69: #{tpu_custom_call.1} parent=63 // pred_check
          %p535 = pneg %p98
        $region70: #{tpu_custom_call.1} parent=63 // pred_check_branch
          %537 = sbr.rel (%p535) target = $region72
        $region71: #{tpu_custom_call.1} parent=63 // pred_region
          %s538 = smul.u32 2, %s44
          %p539 = scmp.lt.s32.totalorder %s43, 1
          %s540 = scalar_select %p539, %s43, 1
          %p541 = scmp.lt.s32.totalorder %s538, 1
          %s542 = scalar_select %p541, %s538, 1
          %s543 = smul.addr %s540, 2
          %s544 = sadd.s32 %s542, %s543
          %s545 = smul.addr %s544, 4
          %s546 = scalar_lea.vmem %s1, %s545
          %s547 = smul.u32 2, %s44
        $region72: #{tpu_custom_call.1} parent=63 // pred_fallthru
          _
        // Predicated region
        $region73: #{tpu_custom_call.1} parent=63 // pred_check
          %p548 = pneg %p124
        $region74: #{tpu_custom_call.1} parent=63 // pred_check_branch
          %550 = sbr.rel (%p548) target = $region76
        $region75: #{tpu_custom_call.1} parent=63 // pred_region
          %s551 = sand.u32 %s36, 1
          %s552 = scalar_lea.sflag [#allocation8], %s551
          %s553 = sand.u32 %s114, 1
          %s554 = smul.addr %s553, 8
          %s555 = scalar_lea.vmem [#allocation7], %s554
          %557 = vsyncadd %s552, 0
          %s558 = smul.addr %s43, 8
          %s559 = scalar_lea.hbm %s2, %s558
          %s561 = sshll.u32 %s559, 4
          %s562 = int_to_ptr.hbm [resolvable:$true] %s561
          %s563 = sshll.u32 %s555, 4
          %s564 = int_to_ptr.vmem [resolvable:$true] %s563
          %566 = dma.hbm_to_vmem [thread:$0]  %s562, 128, %s564, %s552
        $region76: #{tpu_custom_call.1} parent=63 // pred_fallthru
          _
      $region64: #{tpu_custom_call.1} parent=5 // pred_fallthru
        _
      %p567 = scmp.le.s32.totalorder 1, %s36
      %p568 = scmp.lt.s32.totalorder %s36, 3
      %p569 = pnand %p567, %p568
      %p570 = pneg %p569
      // Predicated region
      $region77: #{tpu_custom_call.1} parent=5 // pred_check
        _
      $region78: #{tpu_custom_call.1} parent=5 // pred_check_branch
        %572 = sbr.rel (%p569) target = $region80
      $region79: #{tpu_custom_call.1} parent=5 // pred_region
        %s573 = ssub.s32 %s36, 1
        %s574 = sand.u32 %s63, 1
        %s575 = scalar_lea.sflag [#allocation5], %s574
        %s576 = sand.u32 %s63, 1
        %s577 = smul.addr %s576, 32
        %s578 = scalar_lea.vmem [#allocation4], %s577
        // Predicated region
        $region81: #{tpu_custom_call.1} parent=79 // pred_check
          %p579 = pneg %p76
        $region82: #{tpu_custom_call.1} parent=79 // pred_check_branch
          %581 = sbr.rel (%p579) target = $region84
        $region83: #{tpu_custom_call.1} parent=79 // pred_region
          %583 = dma.done %s575, 512
        $region84: #{tpu_custom_call.1} parent=79 // pred_fallthru
          _
        %s584 = sand.u32 %s41, 1
        %s585 = scalar_lea.sflag [#allocation8], %s584
        %s586 = sand.u32 %s117, 1
        %s587 = smul.addr %s586, 8
        %s588 = scalar_lea.vmem [#allocation7], %s587
        // Predicated region
        $region85: #{tpu_custom_call.1} parent=79 // pred_check
          %p589 = pneg %p130
        $region86: #{tpu_custom_call.1} parent=79 // pred_check_branch
          %591 = sbr.rel (%p589) target = $region88
        $region87: #{tpu_custom_call.1} parent=79 // pred_region
          %593 = dma.done %s585, 128
        $region88: #{tpu_custom_call.1} parent=79 // pred_fallthru
          _
        // Predicated region
        $region89: #{tpu_custom_call.1} parent=79 // pred_check
          %p594 = pneg %p277
        $region90: #{tpu_custom_call.1} parent=79 // pred_check_branch
          %596 = sbr.rel (%p594) target = $region92
        $region91: #{tpu_custom_call.1} parent=79 // pred_region
          %598 = dma.done [#allocation8], 512
        $region92: #{tpu_custom_call.1} parent=79 // pred_fallthru
          _
        // Predicated region
        $region93: #{tpu_custom_call.1} parent=79 // pred_check
          %p599 = pneg %p319
        $region94: #{tpu_custom_call.1} parent=79 // pred_check_branch
          %601 = sbr.rel (%p599) target = $region96
        $region95: #{tpu_custom_call.1} parent=79 // pred_region
          %603 = dma.done [#allocation11], 512
        $region96: #{tpu_custom_call.1} parent=79 // pred_fallthru
          _
        %s604 = sand.u32 %s63, 1
        %s605 = scalar_lea.sflag [#allocation5], %s604
        %s606 = sand.u32 %s63, 1
        %s607 = smul.addr %s606, 32
        %s608 = scalar_lea.vmem [#allocation4], %s607
        %p609 = pneg %p76
        %p610 = pneg %p73
        %s611 = smul.u32 2, %s46
        %p612 = scmp.lt.s32.totalorder %s45, 1
        %s613 = scalar_select %p612, %s45, 1
        %p614 = scmp.lt.s32.totalorder %s611, 1
        %s615 = scalar_select %p614, %s611, 1
        %s616 = smul.addr %s613, 2
        %s617 = sadd.s32 %s615, %s616
        %s618 = smul.addr %s617, 4
        %s619 = scalar_lea.vmem %s1, %s618
        %p620 = pneg %p104
        %p621 = pneg %p101
        %s622 = sand.u32 %s41, 1
        %s623 = scalar_lea.sflag [#allocation8], %s622
        %s624 = sand.u32 %s117, 1
        %s625 = smul.addr %s624, 8
        %s626 = scalar_lea.vmem [#allocation7], %s625
        %p627 = pneg %p130
        %p628 = pneg %p127
        %p629 = pneg %p151
        %p630 = pneg %p148
        %p631 = pneg %p172
        %p632 = pneg %p169
        %p633 = pneg %p193
        %p634 = pneg %p190
        %p635 = pneg %p214
        %p636 = pneg %p211
        %p637 = pneg %p235
        %p638 = pneg %p232
        %p639 = pneg %p256
        %p640 = pneg %p253
        %p641 = pneg %p277
        %p642 = pneg %p274
        %p643 = pneg %p298
        %p644 = pneg %p295
        %p645 = pneg %p319
        %p646 = pneg %p316
        %p647 = pneg %p340
        %p648 = pneg %p337
        %p649 = pneg %p361
        %p650 = pneg %p358
        %p651 = pneg %p382
        %p652 = pneg %p379
        %p653 = pneg %p408
        %p654 = pneg %p405
        %s655 = sand.u32 %s395, 1
        %s656 = scalar_lea.sflag [#allocation6], %s655
        %s657 = sand.u32 %s395, 1
        %s658 = smul.addr %s657, 8
        %s659 = scalar_lea.vmem [#allocation12], %s658
        %p660 = pneg %p434
        %p661 = pneg %p431
        %s662 = sand.u32 %s421, 1
        %s663 = scalar_lea.sflag [#allocation14], %s662
        %s664 = sand.u32 %s421, 1
        %s665 = smul.addr %s664, 8
        %s666 = scalar_lea.vmem [#allocation13], %s665
        %s667 = smul.u32 2, %s46
        %s668 = smul.u32 2, %s46
        %p669 = scmp.lt.s32.totalorder %s45, 1
        %s670 = scalar_select %p669, %s45, 1
        %p671 = scmp.lt.s32.totalorder %s668, 1
        %s672 = scalar_select %p671, %s668, 1
        %s673 = smul.addr %s670, 2
        %s674 = sadd.s32 %s672, %s673
        %s675 = smul.addr %s674, 4
        %s676 = scalar_lea.vmem %s1, %s675
        %s677 = smul.u32 2, %s46
        %p679 = scmp.eq.s32.totalorder %s46, 0
        // Predicated region
        $region97: #{tpu_custom_call.1} parent=79 // pred_check
          %p680 = pneg %p679
        $region98: #{tpu_custom_call.1} parent=79 // pred_check_branch
          %682 = sbr.rel (%p680) target = $region100
        $region99: #{tpu_custom_call.1} parent=79 // pred_region
          %vm683 = vcmask 261120
          %684 = vst.msk [vmem:[#allocation2] sm:$0xff] %vm683, 0.0
          %vm685 = vcmask 7168
          %686 = vst.msk [vmem:[#allocation3] sm:$0xff] %vm685, 0.0
        $region100: #{tpu_custom_call.1} parent=79 // pred_fallthru
          _
        %v687 = vld [vmem:[%s676] sm:$0xff]
        %v688 = vunpack.c.l.bf16 %v687
        %v689 = vunpack.c.h.bf16 %v687
        %vm690 = vcmp.gt.f32.partialorder %v688, 0.0
        %vm691 = vcmp.gt.f32.partialorder %v689, 0.0
        %v692 = vsel %vm690, 1, 0
        %v693 = vsel %vm691, 1, 0
        %v694 = vcvt.s32.f32 %v692
        %v695 = vcvt.s32.f32 %v693
        %v696 = vpack.c.bf16 %v694, %v694
        %v697 = vpack.c.bf16 %v695, %v695
        %v698 = vld [vmem:[#allocation3] sm:$0xff]
        %v699 = vadd.f32 %v694, %v695
        %700 = vadd.xlane.f32.xlu0 %v699
        %v701 = vpop.xlane.xlu0 %700
        %v702 = vadd.f32 %v698, %v701
        %vm703 = vcmask 7168
        %704 = vst.msk [vmem:[#allocation3] sm:$0xff] %vm703, %v702
        %v705 = vld [vmem:[#allocation2] sm:$0xff]
        %v706 = vld [vmem:[%s578] sm:$0xff]
        %v707 = vld [vmem:[%s578 + $0x8] sm:$0xff]
        %v708 = vld [vmem:[%s578 + $0x10] sm:$0xff]
        %v709 = vld [vmem:[%s578 + $0x18] sm:$0xff]
        %v714 = vunpack.c.l.b16 %v706
        %v715 = vunpack.c.h.b16 %v706
        %v716 = vunpack.c.l.b16 %v707
        %v717 = vunpack.c.h.b16 %v707
        %v718 = vunpack.c.l.b16 %v708
        %v719 = vunpack.c.h.b16 %v708
        %v720 = vunpack.c.l.b16 %v709
        %v721 = vunpack.c.h.b16 %v709
        %v722 = vpack.c.b16 %v716, %v714
        %v723 = vpack.c.b16 %v717, %v715
        %v724 = vpack.c.b16 %v720, %v718
        %v725 = vpack.c.b16 %v721, %v719
        %730 = vmatpush.bf16.xpose.msra.mxu0 0
        %731 = vmatpush.bf16.xpose.msra.mxu0 0
        %732 = vmatpush.bf16.xpose.msra.mxu0 0
        %733 = vmatpush.bf16.xpose.msra.mxu0 0
        %734 = vmatpush.bf16.xpose.msra.mxu0 0
        %735 = vmatpush.bf16.xpose.msra.mxu0 0
        %736 = vmatpush.bf16.xpose.msra.mxu0 %v724
        %737 = vmatpush.bf16.xpose.msra.mxu0 %v722
        %738 = vmatmul.bf16.gmra.mxu0 %v696
        %v739 = vpop.f32.mrf.mxu0
        %v740 = vadd.f32 0.0, %v739
        %v741 = vpop.f32.mrf.mxu0
        %742 = vdwg.mxu0
        %743 = vmatpush.bf16.xpose.msra.mxu0 0
        %744 = vmatpush.bf16.xpose.msra.mxu0 0
        %745 = vmatpush.bf16.xpose.msra.mxu0 0
        %746 = vmatpush.bf16.xpose.msra.mxu0 0
        %747 = vmatpush.bf16.xpose.msra.mxu0 0
        %748 = vmatpush.bf16.xpose.msra.mxu0 0
        %749 = vmatpush.bf16.xpose.msra.mxu0 %v725
        %750 = vmatpush.bf16.xpose.msra.mxu0 %v723
        %751 = vmatmul.bf16.gmra.mxu0 %v697
        %v752 = vpop.f32.mrf.mxu0
        %v753 = vadd.f32 %v740, %v752
        %v754 = vpop.f32.mrf.mxu0
        %755 = vdwg.mxu0
        %v756 = vadd.f32 %v705, %v753
        %vm757 = vcmask 261120
        %758 = vst.msk [vmem:[#allocation2] sm:$0xff] %vm757, %v756
        // Predicated region
        $region101: #{tpu_custom_call.1} parent=79 // pred_check
          %p759 = pneg %p679
        $region102: #{tpu_custom_call.1} parent=79 // pred_check_branch
          %761 = sbr.rel (%p759) target = $region104
        $region103: #{tpu_custom_call.1} parent=79 // pred_region
          %v762 = vld [vmem:[#allocation3] sm:$0xff]
          %v763 = vadd.f32 %v762, 1e-08
          %v764 = vrcp.pop %v763
          %v765 = vld [vmem:[#allocation2] sm:$0xff]
          %767 = vset.pattern.permute.xlu0 0
          %768 = vperm.xlu0 %767, %v764
          %v769 = vpop.permute.xlu0 %768
          %v771 = vmul.f32 %v765, %v769
          %v772 = vld [vmem:[%s3] sm:$0x1]
          %v773 = vld [vmem:[%s4] sm:$0x1]
          %v774 = vsel %vm757, %v771, 0.0
          %775 = vadd.xlane.f32.xlu0 %v774
          %v776 = vpop.xlane.xlu0 %775
          %v777 = vrcp.pop 32.0
          %v778 = vmul.f32 32.0, %v777
          %v779 = vsub.f32 1.0, %v778
          %v780 = vmul.f32 %v777, %v779
          %v781 = vadd.f32 %v777, %v780
          %vm782 = vweird.f32 %v777
          %v783 = vsel %vm782, %v777, %v781
          %v784 = vmul.f32 %v776, %v783
          %v785 = vsub.f32 %v771, %v784
          %v786 = vmul.f32 %v785, %v785
          %v787 = vsel %vm757, %v786, 0.0
          %788 = vadd.xlane.f32.xlu0 %v787
          %v789 = vpop.xlane.xlu0 %788
          %v790 = vmul.f32 %v789, %v783
          %v791 = vadd.f32 %v790, 1e-05
          %v792 = vrsqrt.pop %v791
          %v793 = vmul.f32 %v792, %v791
          %v794 = vmul.f32 %v793, %v792
          %v795 = vmul.f32 0.5, %v794
          %v796 = vsub.f32 1.5, %v795
          %v797 = vmul.f32 %v792, %v796
          %vm798 = vweird.f32 %v791
          %vm799 = vweird.f32 %v792
          %vm800 = vmor %vm798, %vm799
          %v801 = vsel %vm800, %v792, %v797
          %v802 = vmul.f32 %v785, %v801
          %v804 = vperm.slane %v772, 0
          %v806 = vmul.f32 %v802, %v804
          %v808 = vperm.slane %v773, 0
          %v810 = vadd.f32 %v806, %v808
          %v811 = vld [vmem:[%s5] sm:$0xff]
          %v812 = vld [vmem:[%s5 + $0x8] sm:$0xff]
          %v813 = vld [vmem:[%s5 + $0x10] sm:$0xff]
          %v814 = vld [vmem:[%s5 + $0x18] sm:$0xff]
          %v815 = vld [vmem:[%s6] sm:$0x1]
          %v817 = vperm.slane %v815, 0
          %v820 = vsel %vm757, %v810, 0
          %822 = vmatpush.msra.mxu0 0.0
          %823 = vmatpush.msra.mxu0 0.0
          %824 = vmatpush.msra.mxu0 0.0
          %825 = vmatpush.msra.mxu0 0.0
          %826 = vmatpush.msra.mxu0 0.0
          %827 = vmatpush.msra.mxu0 0.0
          %828 = vmatpush.msra.mxu0 0.0
          %829 = vmatpush.msra.mxu0 0.0
          %830 = vmatpush.msra.mxu0 0.0
          %831 = vmatpush.msra.mxu0 0.0
          %832 = vmatpush.msra.mxu0 0.0
          %833 = vmatpush.msra.mxu0 0.0
          %834 = vmatpush.msra.mxu0 %v814
          %835 = vmatpush.msra.mxu0 %v813
          %836 = vmatpush.msra.mxu0 %v812
          %837 = vmatpush.msra.mxu0 %v811
          %838 = vmatmul.f32.gmra.mxu0 %v820
          %v839 = vpop.f32.mrf.mxu0
          %v840 = vadd.f32 %v817, %v839
          %841 = vdwg.mxu0
          %v842 = vld [vmem:[%s588] sm:$0xff]
          %v843 = vadd.f32 %v840, %v842
          %844 = vst.msk [vmem:[%s659] sm:$0xff] %vm757, %v843
          %v845 = vld [vmem:[%s7] sm:$0x1]
          %v846 = vld [vmem:[%s8] sm:$0x1]
          %v847 = vsel %vm757, %v843, 0.0
          %848 = vadd.xlane.f32.xlu0 %v847
          %v849 = vpop.xlane.xlu0 %848
          %v850 = vmul.f32 %v849, %v783
          %v851 = vsub.f32 %v843, %v850
          %v852 = vmul.f32 %v851, %v851
          %v853 = vsel %vm757, %v852, 0.0
          %854 = vadd.xlane.f32.xlu0 %v853
          %v855 = vpop.xlane.xlu0 %854
          %v856 = vmul.f32 %v855, %v783
          %v857 = vadd.f32 %v856, 1e-05
          %v858 = vrsqrt.pop %v857
          %v859 = vmul.f32 %v858, %v857
          %v860 = vmul.f32 %v859, %v858
          %v861 = vmul.f32 0.5, %v860
          %v862 = vsub.f32 1.5, %v861
          %v863 = vmul.f32 %v858, %v862
          %vm864 = vweird.f32 %v857
          %vm865 = vweird.f32 %v858
          %vm866 = vmor %vm864, %vm865
          %v867 = vsel %vm866, %v858, %v863
          %v868 = vmul.f32 %v851, %v867
          %v870 = vperm.slane %v845, 0
          %v872 = vmul.f32 %v868, %v870
          %v874 = vperm.slane %v846, 0
          %v876 = vadd.f32 %v872, %v874
          %v877 = vld [vmem:[#allocation9] sm:$0xff]
          %v878 = vld [vmem:[#allocation9 + $0x8] sm:$0xff]
          %v879 = vld [vmem:[#allocation9 + $0x10] sm:$0xff]
          %v880 = vld [vmem:[#allocation9 + $0x18] sm:$0xff]
          %v881 = vld [vmem:[%s10] sm:$0x1]
          %v883 = vperm.slane %v881, 0
          %v886 = vsel %vm757, %v876, 0
          %888 = vmatpush.msra.mxu0 0.0
          %889 = vmatpush.msra.mxu0 0.0
          %890 = vmatpush.msra.mxu0 0.0
          %891 = vmatpush.msra.mxu0 0.0
          %892 = vmatpush.msra.mxu0 0.0
          %893 = vmatpush.msra.mxu0 0.0
          %894 = vmatpush.msra.mxu0 0.0
          %895 = vmatpush.msra.mxu0 0.0
          %896 = vmatpush.msra.mxu0 0.0
          %897 = vmatpush.msra.mxu0 0.0
          %898 = vmatpush.msra.mxu0 0.0
          %899 = vmatpush.msra.mxu0 0.0
          %900 = vmatpush.msra.mxu0 %v880
          %901 = vmatpush.msra.mxu0 %v879
          %902 = vmatpush.msra.mxu0 %v878
          %903 = vmatpush.msra.mxu0 %v877
          %904 = vmatmul.f32.gmra.mxu0 %v886
          %v905 = vpop.f32.mrf.mxu0
          %v906 = vadd.f32 %v883, %v905
          %907 = vdwg.mxu0
          %v908 = vmax.f32 %v906, 0.0
          %v909 = vld [vmem:[#allocation10] sm:$0xff]
          %v910 = vld [vmem:[#allocation10 + $0x8] sm:$0xff]
          %v911 = vld [vmem:[#allocation10 + $0x10] sm:$0xff]
          %v912 = vld [vmem:[#allocation10 + $0x18] sm:$0xff]
          %v913 = vld [vmem:[%s12] sm:$0x1]
          %v915 = vperm.slane %v913, 0
          %v918 = vsel %vm757, %v908, 0
          %920 = vmatpush.msra.mxu0 0.0
          %921 = vmatpush.msra.mxu0 0.0
          %922 = vmatpush.msra.mxu0 0.0
          %923 = vmatpush.msra.mxu0 0.0
          %924 = vmatpush.msra.mxu0 0.0
          %925 = vmatpush.msra.mxu0 0.0
          %926 = vmatpush.msra.mxu0 0.0
          %927 = vmatpush.msra.mxu0 0.0
          %928 = vmatpush.msra.mxu0 0.0
          %929 = vmatpush.msra.mxu0 0.0
          %930 = vmatpush.msra.mxu0 0.0
          %931 = vmatpush.msra.mxu0 0.0
          %932 = vmatpush.msra.mxu0 %v912
          %933 = vmatpush.msra.mxu0 %v911
          %934 = vmatpush.msra.mxu0 %v910
          %935 = vmatpush.msra.mxu0 %v909
          %936 = vmatmul.f32.gmra.mxu0 %v918
          %v937 = vpop.f32.mrf.mxu0
          %v938 = vadd.f32 %v915, %v937
          %939 = vdwg.mxu0
          %v940 = vmax.f32 %v938, 0.0
          %v941 = vld [vmem:[%s13] sm:$0xff]
          %v942 = vld [vmem:[%s13 + $0x8] sm:$0xff]
          %v943 = vld [vmem:[%s13 + $0x10] sm:$0xff]
          %v944 = vld [vmem:[%s13 + $0x18] sm:$0xff]
          %v945 = vld [vmem:[%s14] sm:$0x1]
          %v947 = vperm.slane %v945, 0
          %v950 = vsel %vm757, %v940, 0
          %952 = vmatpush.msra.mxu0 0.0
          %953 = vmatpush.msra.mxu0 0.0
          %954 = vmatpush.msra.mxu0 0.0
          %955 = vmatpush.msra.mxu0 0.0
          %956 = vmatpush.msra.mxu0 0.0
          %957 = vmatpush.msra.mxu0 0.0
          %958 = vmatpush.msra.mxu0 0.0
          %959 = vmatpush.msra.mxu0 0.0
          %960 = vmatpush.msra.mxu0 0.0
          %961 = vmatpush.msra.mxu0 0.0
          %962 = vmatpush.msra.mxu0 0.0
          %963 = vmatpush.msra.mxu0 0.0
          %964 = vmatpush.msra.mxu0 %v944
          %965 = vmatpush.msra.mxu0 %v943
          %966 = vmatpush.msra.mxu0 %v942
          %967 = vmatpush.msra.mxu0 %v941
          %968 = vmatmul.f32.gmra.mxu0 %v950
          %v969 = vpop.f32.mrf.mxu0
          %v970 = vadd.f32 %v947, %v969
          %971 = vdwg.mxu0
          %vm972 = vcmask 130048
          %973 = vst.msk [vmem:[%s666] sm:$0xff] %vm972, %v970
        $region104: #{tpu_custom_call.1} parent=79 // pred_fallthru
          _
        %s974 = sand.u32 %s395, 1
        %s975 = scalar_lea.sflag [#allocation6], %s974
        %s976 = sand.u32 %s395, 1
        %s977 = smul.addr %s976, 8
        %s978 = scalar_lea.vmem [#allocation12], %s977
        %s979 = sand.u32 %s421, 1
        %s980 = scalar_lea.sflag [#allocation14], %s979
        %s981 = sand.u32 %s421, 1
        %s982 = smul.addr %s981, 8
        %s983 = scalar_lea.vmem [#allocation13], %s982
        // Predicated region
        $region105: #{tpu_custom_call.1} parent=79 // pred_check
          %p984 = pneg %p405
        $region106: #{tpu_custom_call.1} parent=79 // pred_check_branch
          %986 = sbr.rel (%p984) target = $region108
        $region107: #{tpu_custom_call.1} parent=79 // pred_region
          %988 = vsyncadd %s975, 0
          %s989 = smul.addr %s45, 8
          %s990 = scalar_lea.hbm %s15, %s989
          %s992 = sshll.u32 %s978, 4
          %s993 = int_to_ptr.vmem [resolvable:$true] %s992
          %s994 = sshll.u32 %s990, 4
          %s995 = int_to_ptr.hbm [resolvable:$true] %s994
          %997 = dma.vmem_to_hbm [thread:$0]  %s993, 128, %s995, %s975
        $region108: #{tpu_custom_call.1} parent=79 // pred_fallthru
          _
        // Predicated region
        $region109: #{tpu_custom_call.1} parent=79 // pred_check
          %p998 = pneg %p431
        $region110: #{tpu_custom_call.1} parent=79 // pred_check_branch
          %1000 = sbr.rel (%p998) target = $region112
        $region111: #{tpu_custom_call.1} parent=79 // pred_region
          %1002 = vsyncadd %s980, 0
          %s1003 = smul.addr %s45, 8
          %s1004 = scalar_lea.hbm %s16, %s1003
          %s1006 = sshll.u32 %s983, 4
          %s1007 = int_to_ptr.vmem [resolvable:$true] %s1006
          %s1008 = sshll.u32 %s1004, 4
          %s1009 = int_to_ptr.hbm [resolvable:$true] %s1008
          %1011 = dma.vmem_to_hbm [thread:$0]  %s1007, 128, %s1009, %s980
        $region112: #{tpu_custom_call.1} parent=79 // pred_fallthru
          _
      $region80: #{tpu_custom_call.1} parent=5 // pred_fallthru
        _
      %p1012 = scmp.le.s32.totalorder 2, %s36
      // Predicated region
      $region113: #{tpu_custom_call.1} parent=5 // pred_check
        %p1013 = pneg %p1012
      $region114: #{tpu_custom_call.1} parent=5 // pred_check_branch
        %1015 = sbr.rel (%p1013) target = $region116
      $region115: #{tpu_custom_call.1} parent=5 // pred_region
        %s1016 = ssub.s32 %s36, 2
        // Predicated region
        $region117: #{tpu_custom_call.1} parent=115 // pred_check
          %p1017 = pneg %p411
        $region118: #{tpu_custom_call.1} parent=115 // pred_check_branch
          %1019 = sbr.rel (%p1017) target = $region120
        $region119: #{tpu_custom_call.1} parent=115 // pred_region
          %s1020 = sand.u32 %s396, 1
          %s1021 = scalar_lea.sflag [#allocation6], %s1020
          %s1022 = sand.u32 %s396, 1
          %s1023 = smul.addr %s1022, 8
          %s1024 = scalar_lea.vmem [#allocation12], %s1023
          %1026 = dma.done %s1021, 128
        $region120: #{tpu_custom_call.1} parent=115 // pred_fallthru
          _
        // Predicated region
        $region121: #{tpu_custom_call.1} parent=115 // pred_check
          %p1027 = pneg %p437
        $region122: #{tpu_custom_call.1} parent=115 // pred_check_branch
          %1029 = sbr.rel (%p1027) target = $region124
        $region123: #{tpu_custom_call.1} parent=115 // pred_region
          %s1030 = sand.u32 %s422, 1
          %s1031 = scalar_lea.sflag [#allocation14], %s1030
          %s1032 = sand.u32 %s422, 1
          %s1033 = smul.addr %s1032, 8
          %s1034 = scalar_lea.vmem [#allocation13], %s1033
          %1036 = dma.done %s1031, 128
        $region124: #{tpu_custom_call.1} parent=115 // pred_fallthru
          _
      $region116: #{tpu_custom_call.1} parent=5 // pred_fallthru
        _
    $region6: #{tpu_custom_call.1} parent=1 // loop_footer
      %s40 = sadd.s32 1, %s36
    $region7: #{tpu_custom_call.1} parent=1 // loop_footer_branch
      %35 = sbr.rel target = $region3
    $region8: #{tpu_custom_call.1} parent=1 // loop_exit
      _
    %1037 = vsyncpa [#allocation5], 1
    %s1038 = scalar_lea.sflag [#allocation5], 1
    %1039 = vsyncpa %s1038, 1
    %1040 = vsyncpa [#allocation8], 1
    %s1041 = scalar_lea.sflag [#allocation8], 1
    %1042 = vsyncpa %s1041, 1
    %1043 = vsyncpa [#allocation11], 1
    %1044 = vsyncpa [#allocation6], 1
    %s1045 = scalar_lea.sflag [#allocation6], 1
    %1046 = vsyncpa %s1045, 1
    %1047 = vsyncpa [#allocation14], 1
    %s1048 = scalar_lea.sflag [#allocation14], 1
    %1049 = vsyncpa %s1048, 1

</llo_original>
